<compile_context>
chip_gen: v6e
topology: v6e:2x2x1
jax: 0.10.0
libtpu: 0.0.40
codegen_flags: <defaults>
</compile_context>

<pallas_src>
import functools

import jax
import jax.numpy as jnp
from jax.experimental import pallas as pl
from jax.experimental.pallas import tpu as pltpu


def _conv_bn_kernel(xs_ref, wk_ref, shift_ref, o_ref, *, th, wo, num_dh, aligned):
    """One output-row tile: acc = sum_dh xs[rows+dh] @ wk[dh], then + BN shift.

    xs_ref    : (1, Hs*Wo, Kd)  stride-2-folded input rows (bf16), whole image
    wk_ref    : (DH, Kd, OC)    BN-scale-folded weights (bf16)
    shift_ref : (1, OC)         BN shift (f32)
    o_ref     : (1, TH*Wo, OC)  output tile (x.dtype)
    """
    t = pl.program_id(1)
    row0 = t * th
    m = th * wo

    def tap(dh):
        start = (row0 + dh) * wo
        if aligned:                      # Wo % 8 == 0 -> 8-aligned sublane start
            start = pl.multiple_of(start, 8)
        a = xs_ref[0, pl.ds(start, m), :]                     # (TH*Wo, Kd)
        return jnp.dot(a, wk_ref[dh], preferred_element_type=jnp.float32)

    acc = tap(0)
    for dh in range(1, num_dh):
        acc = acc + tap(dh)
    o_ref[0] = (acc + shift_ref[...]).astype(o_ref.dtype)


def _pick_row_tile(ho, wo, target_rows):
    """Largest TH dividing Ho with TH*Wo a multiple of 8 and TH*Wo<=target."""
    th_max = max(1, min(ho, target_rows // max(wo, 1)))
    for th in range(th_max, 0, -1):
        if ho % th == 0 and (th * wo) % 8 == 0:
            return th
    return ho   # whole image: block == full dims, always a legal BlockSpec


def conv1_bn1_pallas(x, weight, gamma, beta, running_mean, running_var, *,
                     eps=1e-5, stride=2, padding=3,
                     compute_dtype=jnp.bfloat16, target_m_rows=4096,
                     nchw_output=True):
    """ResNet conv1 + bn1 (inference) forward.  NCHW in -> NCHW out."""
    N, C, H, W = x.shape
    OC, IC, KH, KW = weight.shape
    assert IC == C
    assert stride == 2, "stride-2 parity fold is specialized for stride 2"

    Ho = (H + 2 * padding - KH) // stride + 1
    Wo = (W + 2 * padding - KW) // stride + 1
    DH = (KH + 1) // 2            # row taps per parity after the stride-2 fold
    Hs = Ho + DH - 1              # folded input rows needed
    Kd = 2 * KW * C               # contraction size per row tap (42 here)

    # ---- XLA-side layout prep (bf16, ~1.75x of the f32 input bytes).
    pad_h_hi = max(padding, 2 * Hs - H - padding)
    pad_w_hi = max(padding, 2 * Wo + KW - 2 - W - padding)
    xp = jnp.pad(x.transpose(0, 2, 3, 1).astype(compute_dtype),
                 ((0, 0), (padding, pad_h_hi), (padding, pad_w_hi), (0, 0)))
    # xs[n, hh, wo, p*KW*C + kw*C + c] = xp[n, 2*hh + p, 2*wo + kw, c]
    taps = []
    for p in range(2):
        for kw in range(KW):
            taps.append(xp[:, p:p + 2 * Hs:2, kw:kw + 2 * Wo:2, :])
    xs = jnp.concatenate(taps, axis=-1).reshape(N, Hs * Wo, Kd)

    # ---- fold BN (inference) into the weights: scale -> weights, shift -> add.
    scale = (gamma / jnp.sqrt(running_var + eps)).astype(jnp.float32)
    shift = (beta - running_mean * scale).astype(jnp.float32).reshape(1, OC)

    w_t = weight.astype(jnp.float32).transpose(2, 3, 1, 0)    # (KH, KW, C, OC)
    w_t = w_t * scale                                          # BN scale fold
    w_t = jnp.pad(w_t, ((0, 2 * DH - KH), (0, 0), (0, 0), (0, 0)))
    # (2*DH, KW, C, OC) -> (DH, Kd, OC), kh = 2*dh + p (matches xs ordering)
    wk = w_t.reshape(DH, 2, KW, C, OC).reshape(DH, Kd, OC).astype(compute_dtype)

    # ---- tiling: TH output rows per step -> M tile of TH*Wo GEMM rows.
    TH = _pick_row_tile(Ho, Wo, target_m_rows)
    T = Ho // TH
    M_blk = TH * Wo
    grid = (N, T)

    kernel = functools.partial(_conv_bn_kernel, th=TH, wo=Wo, num_dh=DH,
                               aligned=(Wo % 8 == 0))

    out2 = pl.pallas_call(
        kernel,
        out_shape=jax.ShapeDtypeStruct((N, Ho * Wo, OC), x.dtype),
        grid_spec=pltpu.PrefetchScalarGridSpec(
            num_scalar_prefetch=0,
            grid=grid,
            in_specs=[
                # whole folded image; same block for every row tile -> the DMA
                # is elided on revisits, so it is fetched once per image.
                pl.BlockSpec((1, Hs * Wo, Kd), lambda n, t: (n, 0, 0)),
                pl.BlockSpec((DH, Kd, OC), lambda n, t: (0, 0, 0)),
                pl.BlockSpec((1, OC), lambda n, t: (0, 0)),
            ],
            out_specs=pl.BlockSpec((1, M_blk, OC), lambda n, t: (n, t, 0)),
        ),
        compiler_params=pltpu.CompilerParams(
            dimension_semantics=("parallel", "arbitrary"),
            vmem_limit_bytes=32 * 1024 * 1024,
        ),
    )(xs, wk, shift)

    out_nhwc = out2.reshape(N, Ho, Wo, OC)
    if nchw_output:
        # NCHW only for PyTorch-module fidelity; downstream consumers should
        # take the NHWC result directly (nchw_output=False) and skip this
        # extra HBM round-trip (perf feedback #8).
        return out_nhwc.transpose(0, 3, 1, 2)
    return out_nhwc


if __name__ == "__main__":
    key = jax.random.PRNGKey(0)
    kx, kw_, kg, kb, km, kv = jax.random.split(key, 6)

    # Small NCHW input consistent with ResNet conv1 (3 input channels).
    x = jax.random.normal(kx, (2, 3, 32, 32), dtype=jnp.float32)
    weight = 0.05 * jax.random.normal(kw_, (64, 3, 7, 7), dtype=jnp.float32)
    gamma = 1.0 + 0.1 * jax.random.normal(kg, (64,), dtype=jnp.float32)
    beta = 0.1 * jax.random.normal(kb, (64,), dtype=jnp.float32)
    running_mean = 0.1 * jax.random.normal(km, (64,), dtype=jnp.float32)
    running_var = jax.random.uniform(kv, (64,), jnp.float32, 0.5, 1.5)
    eps = 1e-5

    y = conv1_bn1_pallas(x, weight, gamma, beta, running_mean, running_var,
                         eps=eps)
    jax.block_until_ready(y)

    # Reference: XLA f32 conv + inference BatchNorm.
    y_conv = jax.lax.conv_general_dilated(
        x, weight, window_strides=(2, 2), padding=((3, 3), (3, 3)),
        dimension_numbers=("NCHW", "OIHW", "NCHW"))
    s = gamma / jnp.sqrt(running_var + eps)
    y_ref = (y_conv * s[None, :, None, None]
             + (beta - running_mean * s)[None, :, None, None])

    assert y.shape == y_ref.shape and y.dtype == y_ref.dtype
    max_err = float(jnp.max(jnp.abs(y - y_ref)))
    # bf16 MXU operands -> looser tolerance than the old pure-f32 path.
    assert max_err < 5e-2, f"Pallas conv1+bn1 mismatch vs reference: {max_err}"

    print("KERNEL_OK")
</pallas_src>

<mosaic_0001>
module attributes {stable_mosaic.version = 11 : i64} {
  func.func @_conv_bn_kernel(%arg0: i32, %arg1: i32, %arg2: memref<1x304x42xbf16, #tpu.memory_space<vmem>>, %arg3: memref<4x42x64xbf16, #tpu.memory_space<vmem>>, %arg4: memref<1x64xf32, #tpu.memory_space<vmem>>, %arg5: memref<1x256x64xf32, #tpu.memory_space<vmem>>) attributes {dimension_semantics = [#tpu.dimension_semantics<parallel>, #tpu.dimension_semantics<arbitrary>], iteration_bounds = array<i64: 2, 1>, scalar_prefetch = 0 : i64, scratch_operands = 0 : i64, tpu.core_type = #tpu.core_type<tc>, window_params = [{transform_indices = @transform_0, window_bounds = array<i64: 1, 304, 42>}, {pipeline_mode = #tpu.pipeline_mode<synchronous>, transform_indices = @transform_1, window_bounds = array<i64: 4, 42, 64>}, {pipeline_mode = #tpu.pipeline_mode<synchronous>, transform_indices = @transform_2, window_bounds = array<i64: 1, 64>}, {transform_indices = @transform_3, window_bounds = array<i64: 1, 256, 64>}]} {
    %c16_i32 = arith.constant 16 : i32
    %0 = arith.muli %arg1, %c16_i32 : i32
    %c0_i32 = arith.constant 0 : i32
    %1 = arith.addi %0, %c0_i32 : i32
    %c16_i32_0 = arith.constant 16 : i32
    %2 = arith.muli %1, %c16_i32_0 : i32
    %3 = tpu.assume_multiple %2, 8 : i32
    %c0 = arith.constant 0 : index
    %4 = arith.index_cast %3 : i32 to index
    %c0_1 = arith.constant 0 : index
    %5 = vector.load %arg2[%c0, %4, %c0_1] : memref<1x304x42xbf16, #tpu.memory_space<vmem>>, vector<1x256x42xbf16>
    %6 = vector.shape_cast %5 : vector<1x256x42xbf16> to vector<256x42xbf16>
    %c0_2 = arith.constant 0 : index
    %c0_3 = arith.constant 0 : index
    %c0_4 = arith.constant 0 : index
    %7 = vector.load %arg3[%c0_2, %c0_3, %c0_4] : memref<4x42x64xbf16, #tpu.memory_space<vmem>>, vector<1x42x64xbf16>
    %8 = vector.shape_cast %7 : vector<1x42x64xbf16> to vector<42x64xbf16>
    %cst = arith.constant dense<0.000000e+00> : vector<256x64xf32>
    %9 = tpu.matmul %6, %8, %cst {dimension_numbers = #tpu.dot_dimension_numbers<[1], [0], [0], [1], [0, 0, 1, 1], [], []>} : vector<256x42xbf16>, vector<42x64xbf16>, vector<256x64xf32> -> vector<256x64xf32>
    %c1_i32 = arith.constant 1 : i32
    %10 = arith.addi %0, %c1_i32 : i32
    %c16_i32_5 = arith.constant 16 : i32
    %11 = arith.muli %10, %c16_i32_5 : i32
    %12 = tpu.assume_multiple %11, 8 : i32
    %c0_6 = arith.constant 0 : index
    %13 = arith.index_cast %12 : i32 to index
    %c0_7 = arith.constant 0 : index
    %14 = vector.load %arg2[%c0_6, %13, %c0_7] : memref<1x304x42xbf16, #tpu.memory_space<vmem>>, vector<1x256x42xbf16>
    %15 = vector.shape_cast %14 : vector<1x256x42xbf16> to vector<256x42xbf16>
    %c1 = arith.constant 1 : index
    %c0_8 = arith.constant 0 : index
    %c0_9 = arith.constant 0 : index
    %16 = vector.load %arg3[%c1, %c0_8, %c0_9] : memref<4x42x64xbf16, #tpu.memory_space<vmem>>, vector<1x42x64xbf16>
    %17 = vector.shape_cast %16 : vector<1x42x64xbf16> to vector<42x64xbf16>
    %cst_10 = arith.constant dense<0.000000e+00> : vector<256x64xf32>
    %18 = tpu.matmul %15, %17, %cst_10 {dimension_numbers = #tpu.dot_dimension_numbers<[1], [0], [0], [1], [0, 0, 1, 1], [], []>} : vector<256x42xbf16>, vector<42x64xbf16>, vector<256x64xf32> -> vector<256x64xf32>
    %19 = arith.addf %9, %18 : vector<256x64xf32>
    %c2_i32 = arith.constant 2 : i32
    %20 = arith.addi %0, %c2_i32 : i32
    %c16_i32_11 = arith.constant 16 : i32
    %21 = arith.muli %20, %c16_i32_11 : i32
    %22 = tpu.assume_multiple %21, 8 : i32
    %c0_12 = arith.constant 0 : index
    %23 = arith.index_cast %22 : i32 to index
    %c0_13 = arith.constant 0 : index
    %24 = vector.load %arg2[%c0_12, %23, %c0_13] : memref<1x304x42xbf16, #tpu.memory_space<vmem>>, vector<1x256x42xbf16>
    %25 = vector.shape_cast %24 : vector<1x256x42xbf16> to vector<256x42xbf16>
    %c2 = arith.constant 2 : index
    %c0_14 = arith.constant 0 : index
    %c0_15 = arith.constant 0 : index
    %26 = vector.load %arg3[%c2, %c0_14, %c0_15] : memref<4x42x64xbf16, #tpu.memory_space<vmem>>, vector<1x42x64xbf16>
    %27 = vector.shape_cast %26 : vector<1x42x64xbf16> to vector<42x64xbf16>
    %cst_16 = arith.constant dense<0.000000e+00> : vector<256x64xf32>
    %28 = tpu.matmul %25, %27, %cst_16 {dimension_numbers = #tpu.dot_dimension_numbers<[1], [0], [0], [1], [0, 0, 1, 1], [], []>} : vector<256x42xbf16>, vector<42x64xbf16>, vector<256x64xf32> -> vector<256x64xf32>
    %29 = arith.addf %19, %28 : vector<256x64xf32>
    %c3_i32 = arith.constant 3 : i32
    %30 = arith.addi %0, %c3_i32 : i32
    %c16_i32_17 = arith.constant 16 : i32
    %31 = arith.muli %30, %c16_i32_17 : i32
    %32 = tpu.assume_multiple %31, 8 : i32
    %c0_18 = arith.constant 0 : index
    %33 = arith.index_cast %32 : i32 to index
    %c0_19 = arith.constant 0 : index
    %34 = vector.load %arg2[%c0_18, %33, %c0_19] : memref<1x304x42xbf16, #tpu.memory_space<vmem>>, vector<1x256x42xbf16>
    %35 = vector.shape_cast %34 : vector<1x256x42xbf16> to vector<256x42xbf16>
    %c3 = arith.constant 3 : index
    %c0_20 = arith.constant 0 : index
    %c0_21 = arith.constant 0 : index
    %36 = vector.load %arg3[%c3, %c0_20, %c0_21] : memref<4x42x64xbf16, #tpu.memory_space<vmem>>, vector<1x42x64xbf16>
    %37 = vector.shape_cast %36 : vector<1x42x64xbf16> to vector<42x64xbf16>
    %cst_22 = arith.constant dense<0.000000e+00> : vector<256x64xf32>
    %38 = tpu.matmul %35, %37, %cst_22 {dimension_numbers = #tpu.dot_dimension_numbers<[1], [0], [0], [1], [0, 0, 1, 1], [], []>} : vector<256x42xbf16>, vector<42x64xbf16>, vector<256x64xf32> -> vector<256x64xf32>
    %39 = arith.addf %29, %38 : vector<256x64xf32>
    %c0_23 = arith.constant 0 : index
    %c0_24 = arith.constant 0 : index
    %40 = vector.load %arg4[%c0_23, %c0_24] : memref<1x64xf32, #tpu.memory_space<vmem>>, vector<1x64xf32>
    %41 = vector.broadcast %40 : vector<1x64xf32> to vector<256x64xf32>
    %42 = arith.addf %39, %41 : vector<256x64xf32>
    %c0_25 = arith.constant 0 : index
    %c0_26 = arith.constant 0 : index
    %c0_27 = arith.constant 0 : index
    %43 = vector.load %arg5[%c0_25, %c0_26, %c0_27] : memref<1x256x64xf32, #tpu.memory_space<vmem>>, vector<1x256x64xf32>
    %44 = vector.shape_cast %43 : vector<1x256x64xf32> to vector<256x64xf32>
    %45 = vector.shape_cast %42 : vector<256x64xf32> to vector<1x256x64xf32>
    tpu.vector_store %arg5[%c0_25, %c0_26, %c0_27], %45 {strides = array<i32>} : memref<1x256x64xf32, #tpu.memory_space<vmem>>, vector<1x256x64xf32>,
    return
  }
  func.func @transform_0(%arg0: i32, %arg1: i32) -> (i32, i32, i32) {
    %c0_i32 = arith.constant 0 : i32
    %c0_i32_0 = arith.constant 0 : i32
    %c0_i32_1 = arith.constant 0 : i32
    return %arg0, %c0_i32, %c0_i32_0 : i32, i32, i32
  }
  func.func @transform_1(%arg0: i32, %arg1: i32) -> (i32, i32, i32) {
    %c0_i32 = arith.constant 0 : i32
    %c0_i32_0 = arith.constant 0 : i32
    %c0_i32_1 = arith.constant 0 : i32
    %c0_i32_2 = arith.constant 0 : i32
    return %c0_i32, %c0_i32_0, %c0_i32_1 : i32, i32, i32
  }
  func.func @transform_2(%arg0: i32, %arg1: i32) -> (i32, i32) {
    %c0_i32 = arith.constant 0 : i32
    %c0_i32_0 = arith.constant 0 : i32
    %c0_i32_1 = arith.constant 0 : i32
    return %c0_i32, %c0_i32_0 : i32, i32
  }
  func.func @transform_3(%arg0: i32, %arg1: i32) -> (i32, i32, i32) {
    %c0_i32 = arith.constant 0 : i32
    %c0_i32_0 = arith.constant 0 : i32
    return %arg0, %arg1, %c0_i32 : i32, i32, i32
  }
}

</mosaic_0001>

<llo_original>
// kernel: tpu_custom_call.1
$region0: #{tpu_custom_call.1}
  #allocation0 [shape = 'u32[]', space=smem, size = 0x4, offset = 0x4, fixed_abs, tag = 'smem constant byte address 0x4 - core index']
  #allocation1 [shape = 'u32[144,128]{1,0:T(1,128)}', space=vmem, size = 0x12000, scoped, tag = 'internal scratch']
  %s0 = inlined_call_operand.vmem [shape: bf16[2,304,42], index: 0, kind: input, shape index: {}]
  %s1 = inlined_call_operand.vmem [shape: bf16[4,42,64], index: 1, kind: input, shape index: {}]
  %s2 = inlined_call_operand.vmem [shape: f32[1,64], index: 2, kind: input, shape index: {}]
  %s3 = inlined_call_operand.vmem [shape: f32[2,256,64], index: 3, kind: output, shape index: {}]
  %s4 = sld [smem:[#allocation0]]
  $region45: #{tpu_custom_call.1} parent=0
    _
  %s6 = ssub.s32 1, %s4
  %s7 = scalar_select 0, %s6, %s4
  loop: start=0, step=1, limit=4
  $region2: #{tpu_custom_call.1} parent=0 // loop_pre_header
    _
  $region3: #{tpu_custom_call.1} parent=0 // loop_header
    %s9 = sphi 0, %s13
    %p10 = scmp.ge.s32.totalorder %s9, 4
    %s16 = sphi 0, %s28
    %s17 = sphi 0, %s24
    %s18 = sphi 0, %s16
    %s19 = sphi 0, %s17
    %s20 = sphi 0, %s18
    %s21 = sphi 0, %s19
    %s31 = sphi 0, %s33
    %s34 = sphi 0, %s31
    %s35 = sphi 0, %s34
    %s51 = sphi 0, %s35
    %s55 = sphi 0, %s55
    %s57 = sphi 0, %s55
    %s58 = sphi 0, %s57
    %s72 = sphi 0, %s58
    %s76 = sphi 0, %s76
    %s78 = sphi 0, %s76
    %s79 = sphi 0, %s78
    %s93 = sphi 0, %s79
    %s101 = sphi 0, %s103
    %s104 = sphi 0, %s101
    %s105 = sphi 0, %s104
    %s121 = sphi 0, %s105
  $region4: #{tpu_custom_call.1} parent=0 // loop_header_branch
    %12 = sbr.rel (%p10) target = $region8
  $region5: #{tpu_custom_call.1} parent=0 // loop_body
    %s14 = ssub.s32 %s9, 1
    %s15 = ssub.s32 %s9, 2
    %s22 = sadd.s32 1, %s17
    %p23 = scmp.ge.s32.totalorder %s22, 1
    %s24 = scalar_select %p23, 0, %s22
    %s25 = sadd.s32 1, %s16
    %s26 = scalar_select %p23, %s25, %s16
    %p27 = scmp.ge.s32.totalorder %s26, 2
    %s28 = scalar_select %p27, 0, %s26
    %s29 = ssub.s32 %s16, %s28
    %p30 = scmp.eq.s32.totalorder %s29, 0
    %s32 = sadd.s32 %s31, 1
    %s33 = scalar_select %p30, %s31, %s32
    %p36 = pneg %p30
    %p37 = scmp.eq.s32.totalorder %s9, 1
    %p38 = por %p36, %p37
    %p39 = scmp.ne.s32.totalorder %s31, %s34
    %p40 = scmp.eq.s32.totalorder %s9, 0
    %p41 = por %p39, %p40
    %p42 = scmp.ne.s32.totalorder %s31, %s34
    %p43 = scmp.eq.s32.totalorder %s14, 1
    %p44 = por %p42, %p43
    %p45 = scmp.ne.s32.totalorder %s34, %s35
    %p46 = scmp.eq.s32.totalorder %s14, 0
    %p47 = por %p45, %p46
    %p48 = scmp.ne.s32.totalorder %s34, %s35
    %p49 = scmp.eq.s32.totalorder %s15, 1
    %p50 = por %p48, %p49
    %p52 = scmp.ne.s32.totalorder %s35, %s51
    %p53 = scmp.eq.s32.totalorder %s15, 0
    %p54 = por %p52, %p53
    %s56 = sadd.s32 %s55, 1
    %p59 = scmp.eq.s32.totalorder %s9, 1
    %p60 = scmp.ne.s32.totalorder %s55, %s57
    %p61 = scmp.eq.s32.totalorder %s9, 0
    %p62 = por %p60, %p61
    %p63 = scmp.ne.s32.totalorder %s55, %s57
    %p64 = scmp.eq.s32.totalorder %s14, 1
    %p65 = por %p63, %p64
    %p66 = scmp.ne.s32.totalorder %s57, %s58
    %p67 = scmp.eq.s32.totalorder %s14, 0
    %p68 = por %p66, %p67
    %p69 = scmp.ne.s32.totalorder %s57, %s58
    %p70 = scmp.eq.s32.totalorder %s15, 1
    %p71 = por %p69, %p70
    %p73 = scmp.ne.s32.totalorder %s58, %s72
    %p74 = scmp.eq.s32.totalorder %s15, 0
    %p75 = por %p73, %p74
    %s77 = sadd.s32 %s76, 1
    %p80 = scmp.eq.s32.totalorder %s9, 1
    %p81 = scmp.ne.s32.totalorder %s76, %s78
    %p82 = scmp.eq.s32.totalorder %s9, 0
    %p83 = por %p81, %p82
    %p84 = scmp.ne.s32.totalorder %s76, %s78
    %p85 = scmp.eq.s32.totalorder %s14, 1
    %p86 = por %p84, %p85
    %p87 = scmp.ne.s32.totalorder %s78, %s79
    %p88 = scmp.eq.s32.totalorder %s14, 0
    %p89 = por %p87, %p88
    %p90 = scmp.ne.s32.totalorder %s78, %s79
    %p91 = scmp.eq.s32.totalorder %s15, 1
    %p92 = por %p90, %p91
    %p94 = scmp.ne.s32.totalorder %s79, %s93
    %p95 = scmp.eq.s32.totalorder %s15, 0
    %p96 = por %p94, %p95
    %s97 = ssub.s32 %s16, %s28
    %s98 = ssub.s32 %s17, %s24
    %s99 = sor.u32 %s97, %s98
    %p100 = scmp.eq.s32.totalorder %s99, 0
    %s102 = sadd.s32 %s101, 1
    %s103 = scalar_select %p100, %s101, %s102
    %p106 = pneg %p100
    %p107 = scmp.eq.s32.totalorder %s9, 1
    %p108 = por %p106, %p107
    %p109 = scmp.ne.s32.totalorder %s101, %s104
    %p110 = scmp.eq.s32.totalorder %s9, 0
    %p111 = por %p109, %p110
    %p112 = scmp.ne.s32.totalorder %s101, %s104
    %p113 = scmp.eq.s32.totalorder %s14, 1
    %p114 = por %p112, %p113
    %p115 = scmp.ne.s32.totalorder %s104, %s105
    %p116 = scmp.eq.s32.totalorder %s14, 0
    %p117 = por %p115, %p116
    %p118 = scmp.ne.s32.totalorder %s104, %s105
    %p119 = scmp.eq.s32.totalorder %s15, 1
    %p120 = por %p118, %p119
    %p122 = scmp.ne.s32.totalorder %s105, %s121
    %p123 = scmp.eq.s32.totalorder %s15, 0
    %p124 = por %p122, %p123
    %p125 = scmp.le.s32.totalorder 1, %s9
    %p126 = scmp.lt.s32.totalorder %s9, 3
    %p127 = pnand %p125, %p126
    %p128 = pneg %p127
    // Predicated region
    $region9: #{tpu_custom_call.1} parent=5 // pred_check
      _
    $region10: #{tpu_custom_call.1} parent=5 // pred_check_branch
      %130 = sbr.rel (%p127) target = $region12
    $region11: #{tpu_custom_call.1} parent=5 // pred_region
      %s131 = ssub.s32 %s9, 1
      // Predicated region
      $region13: #{tpu_custom_call.1} parent=11 // pred_check
        %p132 = pneg %p68
      $region14: #{tpu_custom_call.1} parent=11 // pred_check_branch
        %134 = sbr.rel (%p132) target = $region16
      $region15: #{tpu_custom_call.1} parent=11 // pred_region
        _
      $region16: #{tpu_custom_call.1} parent=11 // pred_fallthru
        _
      // Predicated region
      $region17: #{tpu_custom_call.1} parent=11 // pred_check
        %p135 = pneg %p89
      $region18: #{tpu_custom_call.1} parent=11 // pred_check_branch
        %137 = sbr.rel (%p135) target = $region20
      $region19: #{tpu_custom_call.1} parent=11 // pred_region
        _
      $region20: #{tpu_custom_call.1} parent=11 // pred_fallthru
        _
    $region12: #{tpu_custom_call.1} parent=5 // pred_fallthru
      _
    %p138 = scmp.lt.s32.totalorder %s9, 2
    // Predicated region
    $region21: #{tpu_custom_call.1} parent=5 // pred_check
      %p139 = pneg %p138
    $region22: #{tpu_custom_call.1} parent=5 // pred_check_branch
      %141 = sbr.rel (%p139) target = $region24
    $region23: #{tpu_custom_call.1} parent=5 // pred_region
      // Predicated region
      $region25: #{tpu_custom_call.1} parent=23 // pred_check
        %p142 = pneg %p41
      $region26: #{tpu_custom_call.1} parent=23 // pred_check_branch
        %144 = sbr.rel (%p142) target = $region28
      $region27: #{tpu_custom_call.1} parent=23 // pred_region
        %p145 = scmp.lt.s32.totalorder %s16, 1
        %s146 = scalar_select %p145, %s16, 1
        %s147 = smul.addr %s146, 38
        %s148 = smul.addr %s147, 4
        %s149 = scalar_lea.vmem %s0, %s148
      $region28: #{tpu_custom_call.1} parent=23 // pred_fallthru
        _
    $region24: #{tpu_custom_call.1} parent=5 // pred_fallthru
      _
    %p150 = scmp.le.s32.totalorder 1, %s9
    %p151 = scmp.lt.s32.totalorder %s9, 3
    %p152 = pnand %p150, %p151
    %p153 = pneg %p152
    // Predicated region
    $region29: #{tpu_custom_call.1} parent=5 // pred_check
      _
    $region30: #{tpu_custom_call.1} parent=5 // pred_check_branch
      %155 = sbr.rel (%p152) target = $region32
    $region31: #{tpu_custom_call.1} parent=5 // pred_region
      %s156 = ssub.s32 %s9, 1
      %p157 = scmp.lt.s32.totalorder %s18, 1
      %s158 = scalar_select %p157, %s18, 1
      %s159 = smul.addr %s158, 38
      %s160 = smul.addr %s159, 4
      %s161 = scalar_lea.vmem %s0, %s160
      %p162 = pneg %p47
      %p163 = pneg %p44
      %p164 = pneg %p68
      %p165 = pneg %p65
      %p166 = pneg %p89
      %p167 = pneg %p86
      %p168 = pneg %p117
      %p169 = pneg %p114
      %s170 = smul.u32 32, %s19
      %p171 = scmp.lt.s32.totalorder %s18, 1
      %s172 = scalar_select %p171, %s18, 1
      %p173 = scmp.lt.s32.totalorder %s170, 31
      %s174 = scalar_select %p173, %s170, 31
      %s175 = smul.addr %s172, 32
      %s176 = sadd.s32 %s174, %s175
      %s177 = smul.addr %s176, 8
      %s178 = scalar_lea.vmem %s3, %s177
      %p179 = scmp.lt.s32.totalorder %s18, 1
      %s180 = scalar_select %p179, %s18, 1
      %s181 = smul.addr %s180, 38
      %s182 = smul.addr %s181, 4
      %s183 = scalar_lea.vmem %s0, %s182
      %s184 = smul.u32 32, %s19
      %p185 = scmp.lt.s32.totalorder %s18, 1
      %s186 = scalar_select %p185, %s18, 1
      %p187 = scmp.lt.s32.totalorder %s184, 31
      %s188 = scalar_select %p187, %s184, 31
      %s189 = smul.addr %s186, 32
      %s190 = sadd.s32 %s188, %s189
      %s191 = smul.addr %s190, 8
      %s192 = scalar_lea.vmem %s3, %s191
      %s193 = smul.u32 32, %s19
      %s195 = smul.u32 %s19, 16
      %s196 = smul.u32 %s19, 256
      %s197 = sshra.s32 %s196, 3
      %s198 = sand.u32 %s196, 7
      %s199 = smul.addr %s197, 4
      %s200 = scalar_lea.vmem %s183, %s199
      %v201 = vld [vmem:[%s200] sm:$0xf]
      %v202 = vld [vmem:[%s200 + $0x4] sm:$0xf]
      %v203 = vld [vmem:[%s200 + $0x8] sm:$0xf]
      %v204 = vld [vmem:[%s200 + $0xc] sm:$0xf]
      %v205 = vld [vmem:[%s200 + $0x10] sm:$0xf]
      %v206 = vld [vmem:[%s200 + $0x14] sm:$0xf]
      %v207 = vld [vmem:[%s200 + $0x18] sm:$0xf]
      %v208 = vld [vmem:[%s200 + $0x1c] sm:$0xf]
      %v209 = vld [vmem:[%s200 + $0x20] sm:$0xf]
      %v210 = vld [vmem:[%s200 + $0x24] sm:$0xf]
      %v211 = vld [vmem:[%s200 + $0x28] sm:$0xf]
      %v212 = vld [vmem:[%s200 + $0x2c] sm:$0xf]
      %v213 = vld [vmem:[%s200 + $0x30] sm:$0xf]
      %v214 = vld [vmem:[%s200 + $0x34] sm:$0xf]
      %v215 = vld [vmem:[%s200 + $0x38] sm:$0xf]
      %v216 = vld [vmem:[%s200 + $0x3c] sm:$0xf]
      %v217 = vld [vmem:[%s200 + $0x40] sm:$0xf]
      %v218 = vld [vmem:[%s200 + $0x44] sm:$0xf]
      %v219 = vld [vmem:[%s200 + $0x48] sm:$0xf]
      %v220 = vld [vmem:[%s200 + $0x4c] sm:$0xf]
      %v221 = vld [vmem:[%s200 + $0x50] sm:$0xf]
      %v222 = vld [vmem:[%s200 + $0x54] sm:$0xf]
      %v223 = vld [vmem:[%s200 + $0x58] sm:$0xf]
      %v224 = vld [vmem:[%s200 + $0x5c] sm:$0xf]
      %v225 = vld [vmem:[%s200 + $0x60] sm:$0xf]
      %v226 = vld [vmem:[%s200 + $0x64] sm:$0xf]
      %v227 = vld [vmem:[%s200 + $0x68] sm:$0xf]
      %v228 = vld [vmem:[%s200 + $0x6c] sm:$0xf]
      %v229 = vld [vmem:[%s200 + $0x70] sm:$0xf]
      %v230 = vld [vmem:[%s200 + $0x74] sm:$0xf]
      %v231 = vld [vmem:[%s200 + $0x78] sm:$0xf]
      %v232 = vld [vmem:[%s200 + $0x7c] sm:$0xf]
      %v233 = vld [vmem:[%s1] sm:$0xf]
      %v234 = vld [vmem:[%s1 + $0x4] sm:$0xf]
      %v235 = vld [vmem:[%s1 + $0x8] sm:$0xf]
      %v236 = vld [vmem:[%s1 + $0xc] sm:$0xf]
      %v237 = vld [vmem:[%s1 + $0x10] sm:$0xf]
      %v238 = vld [vmem:[%s1 + $0x14] sm:$0x1]
      %s239 = sadd.s32 %s195, 1
      %s240 = smul.u32 %s239, 16
      %s241 = sshra.s32 %s240, 3
      %s242 = sand.u32 %s240, 7
      %s243 = smul.addr %s241, 4
      %s244 = scalar_lea.vmem %s183, %s243
      %v245 = vld [vmem:[%s244] sm:$0xf]
      %v246 = vld [vmem:[%s244 + $0x4] sm:$0xf]
      %v247 = vld [vmem:[%s244 + $0x8] sm:$0xf]
      %v248 = vld [vmem:[%s244 + $0xc] sm:$0xf]
      %v249 = vld [vmem:[%s244 + $0x10] sm:$0xf]
      %v250 = vld [vmem:[%s244 + $0x14] sm:$0xf]
      %v251 = vld [vmem:[%s244 + $0x18] sm:$0xf]
      %v252 = vld [vmem:[%s244 + $0x1c] sm:$0xf]
      %v253 = vld [vmem:[%s244 + $0x20] sm:$0xf]
      %v254 = vld [vmem:[%s244 + $0x24] sm:$0xf]
      %v255 = vld [vmem:[%s244 + $0x28] sm:$0xf]
      %v256 = vld [vmem:[%s244 + $0x2c] sm:$0xf]
      %v257 = vld [vmem:[%s244 + $0x30] sm:$0xf]
      %v258 = vld [vmem:[%s244 + $0x34] sm:$0xf]
      %v259 = vld [vmem:[%s244 + $0x38] sm:$0xf]
      %v260 = vld [vmem:[%s244 + $0x3c] sm:$0xf]
      %v261 = vld [vmem:[%s244 + $0x40] sm:$0xf]
      %v262 = vld [vmem:[%s244 + $0x44] sm:$0xf]
      %v263 = vld [vmem:[%s244 + $0x48] sm:$0xf]
      %v264 = vld [vmem:[%s244 + $0x4c] sm:$0xf]
      %v265 = vld [vmem:[%s244 + $0x50] sm:$0xf]
      %v266 = vld [vmem:[%s244 + $0x54] sm:$0xf]
      %v267 = vld [vmem:[%s244 + $0x58] sm:$0xf]
      %v268 = vld [vmem:[%s244 + $0x5c] sm:$0xf]
      %v269 = vld [vmem:[%s244 + $0x60] sm:$0xf]
      %v270 = vld [vmem:[%s244 + $0x64] sm:$0xf]
      %v271 = vld [vmem:[%s244 + $0x68] sm:$0xf]
      %v272 = vld [vmem:[%s244 + $0x6c] sm:$0xf]
      %v273 = vld [vmem:[%s244 + $0x70] sm:$0xf]
      %v274 = vld [vmem:[%s244 + $0x74] sm:$0xf]
      %v275 = vld [vmem:[%s244 + $0x78] sm:$0xf]
      %v276 = vld [vmem:[%s244 + $0x7c] sm:$0xf]
      %s277 = scalar_lea.vmem %s1, 24
      %v278 = vld [vmem:[%s277] sm:$0xf]
      %v279 = vld [vmem:[%s277 + $0x4] sm:$0xf]
      %v280 = vld [vmem:[%s277 + $0x8] sm:$0xf]
      %v281 = vld [vmem:[%s277 + $0xc] sm:$0xf]
      %v282 = vld [vmem:[%s277 + $0x10] sm:$0xf]
      %v283 = vld [vmem:[%s277 + $0x14] sm:$0x1]
      %v316 = vunpack.c.l.b16 %v245
      %v317 = vunpack.c.l.b16 %v246
      %v318 = vunpack.c.l.b16 %v247
      %v319 = vunpack.c.l.b16 %v248
      %v320 = vunpack.c.l.b16 %v249
      %v321 = vunpack.c.l.b16 %v250
      %v322 = vunpack.c.l.b16 %v251
      %v323 = vunpack.c.l.b16 %v252
      %v324 = vunpack.c.l.b16 %v253
      %v325 = vunpack.c.l.b16 %v254
      %v326 = vunpack.c.l.b16 %v255
      %v327 = vunpack.c.l.b16 %v256
      %v328 = vunpack.c.l.b16 %v257
      %v329 = vunpack.c.l.b16 %v258
      %v330 = vunpack.c.l.b16 %v259
      %v331 = vunpack.c.l.b16 %v260
      %v332 = vunpack.c.l.b16 %v261
      %v333 = vunpack.c.l.b16 %v262
      %v334 = vunpack.c.l.b16 %v263
      %v335 = vunpack.c.l.b16 %v264
      %v336 = vunpack.c.l.b16 %v265
      %v337 = vunpack.c.l.b16 %v266
      %v338 = vunpack.c.l.b16 %v267
      %v339 = vunpack.c.l.b16 %v268
      %v340 = vunpack.c.l.b16 %v269
      %v341 = vunpack.c.l.b16 %v270
      %v342 = vunpack.c.l.b16 %v271
      %v343 = vunpack.c.l.b16 %v272
      %v344 = vunpack.c.l.b16 %v273
      %v345 = vunpack.c.l.b16 %v274
      %v346 = vunpack.c.l.b16 %v275
      %v347 = vunpack.c.l.b16 %v276
      %v348 = vpack.c.b16 %v317, %v316
      %v349 = vpack.c.b16 %v319, %v318
      %v350 = vpack.c.b16 %v321, %v320
      %v351 = vpack.c.b16 %v323, %v322
      %v352 = vpack.c.b16 %v325, %v324
      %v353 = vpack.c.b16 %v327, %v326
      %v354 = vpack.c.b16 %v329, %v328
      %v355 = vpack.c.b16 %v331, %v330
      %v356 = vpack.c.b16 %v333, %v332
      %v357 = vpack.c.b16 %v335, %v334
      %v358 = vpack.c.b16 %v337, %v336
      %v359 = vpack.c.b16 %v339, %v338
      %v360 = vpack.c.b16 %v341, %v340
      %v361 = vpack.c.b16 %v343, %v342
      %v362 = vpack.c.b16 %v345, %v344
      %v363 = vpack.c.b16 %v347, %v346
      %v370 = vunpack.c.l.b16 %v278
      %v371 = vunpack.c.l.b16 %v279
      %v372 = vunpack.c.l.b16 %v280
      %v373 = vunpack.c.l.b16 %v281
      %v374 = vunpack.c.l.b16 %v282
      %v375 = vunpack.c.l.b16 %v283
      %v376 = vpack.c.b16 %v371, %v370
      %v377 = vpack.c.b16 %v373, %v372
      %v378 = vpack.c.b16 %v375, %v374
      %vm381 = vcmask 343040
      %v383 = vsel %vm381, %v348, 0
      %v386 = vsel %vm381, %v349, 0
      %v389 = vsel %vm381, %v350, 0
      %v392 = vsel %vm381, %v351, 0
      %v395 = vsel %vm381, %v352, 0
      %v398 = vsel %vm381, %v353, 0
      %v401 = vsel %vm381, %v354, 0
      %v404 = vsel %vm381, %v355, 0
      %v407 = vsel %vm381, %v356, 0
      %v410 = vsel %vm381, %v357, 0
      %v413 = vsel %vm381, %v358, 0
      %v416 = vsel %vm381, %v359, 0
      %v419 = vsel %vm381, %v360, 0
      %v422 = vsel %vm381, %v361, 0
      %v425 = vsel %vm381, %v362, 0
      %v428 = vsel %vm381, %v363, 0
      %vm430 = vcmask 1044480
      %v432 = vsel %vm430, %v378, 0
      %434 = vmatprep.subr.bf16.mxu0 0
      %435 = vmatpush1.bf16.msra.mxu0 0
      %436 = vmatprep.subr.bf16.mxu0 0
      %437 = vmatpush1.bf16.msra.mxu0 0
      %438 = vmatprep.subr.bf16.mxu0 0
      %439 = vmatpush1.bf16.msra.mxu0 0
      %440 = vmatprep.subr.bf16.mxu0 0
      %441 = vmatpush1.bf16.msra.mxu0 0
      %442 = vmatprep.subr.bf16.mxu0 0
      %443 = vmatpush1.bf16.msra.mxu0 0
      %444 = vmatprep.subr.bf16.mxu0 0
      %445 = vmatpush1.bf16.msra.mxu0 %v432
      %446 = vmatprep.subr.bf16.mxu0 0
      %447 = vmatpush1.bf16.msra.mxu0 %v377
      %448 = vmatprep.subr.bf16.mxu0 0
      %449 = vmatpush1.bf16.msra.mxu0 %v376
      %450 = vmatprep.subr.bf16.mxu0 0
      %451 = vmatpush2.bf16.msra.mxu0 0
      %452 = vmatprep.subr.bf16.mxu0 0
      %453 = vmatpush2.bf16.msra.mxu0 0
      %454 = vmatprep.subr.bf16.mxu0 0
      %455 = vmatpush2.bf16.msra.mxu0 0
      %456 = vmatprep.subr.bf16.mxu0 0
      %457 = vmatpush2.bf16.msra.mxu0 0
      %458 = vmatprep.subr.bf16.mxu0 0
      %459 = vmatpush2.bf16.msra.mxu0 0
      %460 = vmatprep.subr.bf16.mxu0 0
      %461 = vmatpush2.bf16.msra.mxu0 0
      %462 = vmatprep.subr.bf16.mxu0 0
      %463 = vmatpush2.bf16.msra.mxu0 0
      %464 = vmatprep.subr.bf16.mxu0 0
      %465 = vmatpush2.bf16.msra.mxu0 0
      %466 = vmatprep.mubr.bf16.mxu0 0
      %467 = vmatmul.mubr.bf16.gmra.mxu0 %v383
      %v468 = vpop.f32.mrf.mxu0
      %v469 = vadd.f32 0.0, %v468
      %v470 = vpop.f32.mrf.mxu0
      %v471 = vpop.f32.mrf.mxu0
      %v472 = vadd.f32 0.0, %v471
      %v473 = vpop.f32.mrf.mxu0
      %474 = vmatprep.mubr.bf16.mxu0 0
      %475 = vmatmul.mubr.bf16.gmra.mxu0 %v386
      %v476 = vpop.f32.mrf.mxu0
      %v477 = vadd.f32 0.0, %v476
      %v478 = vpop.f32.mrf.mxu0
      %v479 = vpop.f32.mrf.mxu0
      %v480 = vadd.f32 0.0, %v479
      %v481 = vpop.f32.mrf.mxu0
      %482 = vmatprep.mubr.bf16.mxu0 0
      %483 = vmatmul.mubr.bf16.gmra.mxu0 %v389
      %v484 = vpop.f32.mrf.mxu0
      %v485 = vadd.f32 0.0, %v484
      %v486 = vpop.f32.mrf.mxu0
      %v487 = vpop.f32.mrf.mxu0
      %v488 = vadd.f32 0.0, %v487
      %v489 = vpop.f32.mrf.mxu0
      %490 = vmatprep.mubr.bf16.mxu0 0
      %491 = vmatmul.mubr.bf16.gmra.mxu0 %v392
      %v492 = vpop.f32.mrf.mxu0
      %v493 = vadd.f32 0.0, %v492
      %v494 = vpop.f32.mrf.mxu0
      %v495 = vpop.f32.mrf.mxu0
      %v496 = vadd.f32 0.0, %v495
      %v497 = vpop.f32.mrf.mxu0
      %498 = vmatprep.mubr.bf16.mxu0 0
      %499 = vmatmul.mubr.bf16.gmra.mxu0 %v395
      %v500 = vpop.f32.mrf.mxu0
      %v501 = vadd.f32 0.0, %v500
      %v502 = vpop.f32.mrf.mxu0
      %v503 = vpop.f32.mrf.mxu0
      %v504 = vadd.f32 0.0, %v503
      %v505 = vpop.f32.mrf.mxu0
      %506 = vmatprep.mubr.bf16.mxu0 0
      %507 = vmatmul.mubr.bf16.gmra.mxu0 %v398
      %v508 = vpop.f32.mrf.mxu0
      %v509 = vadd.f32 0.0, %v508
      %v510 = vpop.f32.mrf.mxu0
      %v511 = vpop.f32.mrf.mxu0
      %v512 = vadd.f32 0.0, %v511
      %v513 = vpop.f32.mrf.mxu0
      %514 = vmatprep.mubr.bf16.mxu0 0
      %515 = vmatmul.mubr.bf16.gmra.mxu0 %v401
      %v516 = vpop.f32.mrf.mxu0
      %v517 = vadd.f32 0.0, %v516
      %v518 = vpop.f32.mrf.mxu0
      %v519 = vpop.f32.mrf.mxu0
      %v520 = vadd.f32 0.0, %v519
      %v521 = vpop.f32.mrf.mxu0
      %522 = vmatprep.mubr.bf16.mxu0 0
      %523 = vmatmul.mubr.bf16.gmra.mxu0 %v404
      %v524 = vpop.f32.mrf.mxu0
      %v525 = vadd.f32 0.0, %v524
      %v526 = vpop.f32.mrf.mxu0
      %v527 = vpop.f32.mrf.mxu0
      %v528 = vadd.f32 0.0, %v527
      %v529 = vpop.f32.mrf.mxu0
      %530 = vmatprep.mubr.bf16.mxu0 0
      %531 = vmatmul.mubr.bf16.gmra.mxu0 %v407
      %v532 = vpop.f32.mrf.mxu0
      %v533 = vadd.f32 0.0, %v532
      %v534 = vpop.f32.mrf.mxu0
      %v535 = vpop.f32.mrf.mxu0
      %v536 = vadd.f32 0.0, %v535
      %v537 = vpop.f32.mrf.mxu0
      %538 = vmatprep.mubr.bf16.mxu0 0
      %539 = vmatmul.mubr.bf16.gmra.mxu0 %v410
      %v540 = vpop.f32.mrf.mxu0
      %v541 = vadd.f32 0.0, %v540
      %v542 = vpop.f32.mrf.mxu0
      %v543 = vpop.f32.mrf.mxu0
      %v544 = vadd.f32 0.0, %v543
      %v545 = vpop.f32.mrf.mxu0
      %546 = vmatprep.mubr.bf16.mxu0 0
      %547 = vmatmul.mubr.bf16.gmra.mxu0 %v413
      %v548 = vpop.f32.mrf.mxu0
      %v549 = vadd.f32 0.0, %v548
      %v550 = vpop.f32.mrf.mxu0
      %v551 = vpop.f32.mrf.mxu0
      %v552 = vadd.f32 0.0, %v551
      %v553 = vpop.f32.mrf.mxu0
      %554 = vmatprep.mubr.bf16.mxu0 0
      %555 = vmatmul.mubr.bf16.gmra.mxu0 %v416
      %v556 = vpop.f32.mrf.mxu0
      %v557 = vadd.f32 0.0, %v556
      %v558 = vpop.f32.mrf.mxu0
      %v559 = vpop.f32.mrf.mxu0
      %v560 = vadd.f32 0.0, %v559
      %v561 = vpop.f32.mrf.mxu0
      %562 = vmatprep.mubr.bf16.mxu0 0
      %563 = vmatmul.mubr.bf16.gmra.mxu0 %v419
      %v564 = vpop.f32.mrf.mxu0
      %v565 = vadd.f32 0.0, %v564
      %v566 = vpop.f32.mrf.mxu0
      %v567 = vpop.f32.mrf.mxu0
      %v568 = vadd.f32 0.0, %v567
      %v569 = vpop.f32.mrf.mxu0
      %570 = vmatprep.mubr.bf16.mxu0 0
      %571 = vmatmul.mubr.bf16.gmra.mxu0 %v422
      %v572 = vpop.f32.mrf.mxu0
      %v573 = vadd.f32 0.0, %v572
      %v574 = vpop.f32.mrf.mxu0
      %v575 = vpop.f32.mrf.mxu0
      %v576 = vadd.f32 0.0, %v575
      %v577 = vpop.f32.mrf.mxu0
      %578 = vmatprep.mubr.bf16.mxu0 0
      %579 = vmatmul.mubr.bf16.gmra.mxu0 %v425
      %v580 = vpop.f32.mrf.mxu0
      %v581 = vadd.f32 0.0, %v580
      %v582 = vpop.f32.mrf.mxu0
      %v583 = vpop.f32.mrf.mxu0
      %v584 = vadd.f32 0.0, %v583
      %v585 = vpop.f32.mrf.mxu0
      %586 = vmatprep.mubr.bf16.mxu0 0
      %587 = vmatmul.mubr.bf16.gmra.mxu0 %v428
      %v588 = vpop.f32.mrf.mxu0
      %v589 = vadd.f32 0.0, %v588
      %v590 = vpop.f32.mrf.mxu0
      %v591 = vpop.f32.mrf.mxu0
      %v592 = vadd.f32 0.0, %v591
      %v593 = vpop.f32.mrf.mxu0
      %594 = vdwg.mxu0
      %v627 = vunpack.c.l.b16 %v201
      %v628 = vunpack.c.l.b16 %v202
      %v629 = vunpack.c.l.b16 %v203
      %v630 = vunpack.c.l.b16 %v204
      %v631 = vunpack.c.l.b16 %v205
      %v632 = vunpack.c.l.b16 %v206
      %v633 = vunpack.c.l.b16 %v207
      %v634 = vunpack.c.l.b16 %v208
      %v635 = vunpack.c.l.b16 %v209
      %v636 = vunpack.c.l.b16 %v210
      %v637 = vunpack.c.l.b16 %v211
      %v638 = vunpack.c.l.b16 %v212
      %v639 = vunpack.c.l.b16 %v213
      %v640 = vunpack.c.l.b16 %v214
      %v641 = vunpack.c.l.b16 %v215
      %v642 = vunpack.c.l.b16 %v216
      %v643 = vunpack.c.l.b16 %v217
      %v644 = vunpack.c.l.b16 %v218
      %v645 = vunpack.c.l.b16 %v219
      %v646 = vunpack.c.l.b16 %v220
      %v647 = vunpack.c.l.b16 %v221
      %v648 = vunpack.c.l.b16 %v222
      %v649 = vunpack.c.l.b16 %v223
      %v650 = vunpack.c.l.b16 %v224
      %v651 = vunpack.c.l.b16 %v225
      %v652 = vunpack.c.l.b16 %v226
      %v653 = vunpack.c.l.b16 %v227
      %v654 = vunpack.c.l.b16 %v228
      %v655 = vunpack.c.l.b16 %v229
      %v656 = vunpack.c.l.b16 %v230
      %v657 = vunpack.c.l.b16 %v231
      %v658 = vunpack.c.l.b16 %v232
      %v659 = vpack.c.b16 %v628, %v627
      %v660 = vpack.c.b16 %v630, %v629
      %v661 = vpack.c.b16 %v632, %v631
      %v662 = vpack.c.b16 %v634, %v633
      %v663 = vpack.c.b16 %v636, %v635
      %v664 = vpack.c.b16 %v638, %v637
      %v665 = vpack.c.b16 %v640, %v639
      %v666 = vpack.c.b16 %v642, %v641
      %v667 = vpack.c.b16 %v644, %v643
      %v668 = vpack.c.b16 %v646, %v645
      %v669 = vpack.c.b16 %v648, %v647
      %v670 = vpack.c.b16 %v650, %v649
      %v671 = vpack.c.b16 %v652, %v651
      %v672 = vpack.c.b16 %v654, %v653
      %v673 = vpack.c.b16 %v656, %v655
      %v674 = vpack.c.b16 %v658, %v657
      %v681 = vunpack.c.l.b16 %v233
      %v682 = vunpack.c.l.b16 %v234
      %v683 = vunpack.c.l.b16 %v235
      %v684 = vunpack.c.l.b16 %v236
      %v685 = vunpack.c.l.b16 %v237
      %v686 = vunpack.c.l.b16 %v238
      %v687 = vpack.c.b16 %v682, %v681
      %v688 = vpack.c.b16 %v684, %v683
      %v689 = vpack.c.b16 %v686, %v685
      %v693 = vsel %vm381, %v659, 0
      %v696 = vsel %vm381, %v660, 0
      %v699 = vsel %vm381, %v661, 0
      %v702 = vsel %vm381, %v662, 0
      %v705 = vsel %vm381, %v663, 0
      %v708 = vsel %vm381, %v664, 0
      %v711 = vsel %vm381, %v665, 0
      %v714 = vsel %vm381, %v666, 0
      %v717 = vsel %vm381, %v667, 0
      %v720 = vsel %vm381, %v668, 0
      %v723 = vsel %vm381, %v669, 0
      %v726 = vsel %vm381, %v670, 0
      %v729 = vsel %vm381, %v671, 0
      %v732 = vsel %vm381, %v672, 0
      %v735 = vsel %vm381, %v673, 0
      %v738 = vsel %vm381, %v674, 0
      %v741 = vsel %vm430, %v689, 0
      %743 = vmatprep.subr.bf16.mxu0 0
      %744 = vmatpush1.bf16.msra.mxu0 0
      %745 = vmatprep.subr.bf16.mxu0 0
      %746 = vmatpush1.bf16.msra.mxu0 0
      %747 = vmatprep.subr.bf16.mxu0 0
      %748 = vmatpush1.bf16.msra.mxu0 0
      %749 = vmatprep.subr.bf16.mxu0 0
      %750 = vmatpush1.bf16.msra.mxu0 0
      %751 = vmatprep.subr.bf16.mxu0 0
      %752 = vmatpush1.bf16.msra.mxu0 0
      %753 = vmatprep.subr.bf16.mxu0 0
      %754 = vmatpush1.bf16.msra.mxu0 %v741
      %755 = vmatprep.subr.bf16.mxu0 0
      %756 = vmatpush1.bf16.msra.mxu0 %v688
      %757 = vmatprep.subr.bf16.mxu0 0
      %758 = vmatpush1.bf16.msra.mxu0 %v687
      %759 = vmatprep.subr.bf16.mxu0 0
      %760 = vmatpush2.bf16.msra.mxu0 0
      %761 = vmatprep.subr.bf16.mxu0 0
      %762 = vmatpush2.bf16.msra.mxu0 0
      %763 = vmatprep.subr.bf16.mxu0 0
      %764 = vmatpush2.bf16.msra.mxu0 0
      %765 = vmatprep.subr.bf16.mxu0 0
      %766 = vmatpush2.bf16.msra.mxu0 0
      %767 = vmatprep.subr.bf16.mxu0 0
      %768 = vmatpush2.bf16.msra.mxu0 0
      %769 = vmatprep.subr.bf16.mxu0 0
      %770 = vmatpush2.bf16.msra.mxu0 0
      %771 = vmatprep.subr.bf16.mxu0 0
      %772 = vmatpush2.bf16.msra.mxu0 0
      %773 = vmatprep.subr.bf16.mxu0 0
      %774 = vmatpush2.bf16.msra.mxu0 0
      %775 = vmatprep.mubr.bf16.mxu0 0
      %776 = vmatmul.mubr.bf16.gmra.mxu0 %v693
      %v777 = vpop.f32.mrf.mxu0
      %v778 = vadd.f32 %v469, %v777
      %v779 = vpop.f32.mrf.mxu0
      %v780 = vpop.f32.mrf.mxu0
      %v781 = vadd.f32 %v472, %v780
      %v782 = vpop.f32.mrf.mxu0
      %783 = vmatprep.mubr.bf16.mxu0 0
      %784 = vmatmul.mubr.bf16.gmra.mxu0 %v696
      %v785 = vpop.f32.mrf.mxu0
      %v786 = vadd.f32 %v477, %v785
      %v787 = vpop.f32.mrf.mxu0
      %v788 = vpop.f32.mrf.mxu0
      %v789 = vadd.f32 %v480, %v788
      %v790 = vpop.f32.mrf.mxu0
      %791 = vmatprep.mubr.bf16.mxu0 0
      %792 = vmatmul.mubr.bf16.gmra.mxu0 %v699
      %v793 = vpop.f32.mrf.mxu0
      %v794 = vadd.f32 %v485, %v793
      %v795 = vpop.f32.mrf.mxu0
      %v796 = vpop.f32.mrf.mxu0
      %v797 = vadd.f32 %v488, %v796
      %v798 = vpop.f32.mrf.mxu0
      %799 = vmatprep.mubr.bf16.mxu0 0
      %800 = vmatmul.mubr.bf16.gmra.mxu0 %v702
      %v801 = vpop.f32.mrf.mxu0
      %v802 = vadd.f32 %v493, %v801
      %v803 = vpop.f32.mrf.mxu0
      %v804 = vpop.f32.mrf.mxu0
      %v805 = vadd.f32 %v496, %v804
      %v806 = vpop.f32.mrf.mxu0
      %807 = vmatprep.mubr.bf16.mxu0 0
      %808 = vmatmul.mubr.bf16.gmra.mxu0 %v705
      %v809 = vpop.f32.mrf.mxu0
      %v810 = vadd.f32 %v501, %v809
      %v811 = vpop.f32.mrf.mxu0
      %v812 = vpop.f32.mrf.mxu0
      %v813 = vadd.f32 %v504, %v812
      %v814 = vpop.f32.mrf.mxu0
      %815 = vmatprep.mubr.bf16.mxu0 0
      %816 = vmatmul.mubr.bf16.gmra.mxu0 %v708
      %v817 = vpop.f32.mrf.mxu0
      %v818 = vadd.f32 %v509, %v817
      %v819 = vpop.f32.mrf.mxu0
      %v820 = vpop.f32.mrf.mxu0
      %v821 = vadd.f32 %v512, %v820
      %v822 = vpop.f32.mrf.mxu0
      %823 = vmatprep.mubr.bf16.mxu0 0
      %824 = vmatmul.mubr.bf16.gmra.mxu0 %v711
      %v825 = vpop.f32.mrf.mxu0
      %v826 = vadd.f32 %v517, %v825
      %v827 = vpop.f32.mrf.mxu0
      %v828 = vpop.f32.mrf.mxu0
      %v829 = vadd.f32 %v520, %v828
      %v830 = vpop.f32.mrf.mxu0
      %831 = vmatprep.mubr.bf16.mxu0 0
      %832 = vmatmul.mubr.bf16.gmra.mxu0 %v714
      %v833 = vpop.f32.mrf.mxu0
      %v834 = vadd.f32 %v525, %v833
      %v835 = vpop.f32.mrf.mxu0
      %v836 = vpop.f32.mrf.mxu0
      %v837 = vadd.f32 %v528, %v836
      %v838 = vpop.f32.mrf.mxu0
      %839 = vmatprep.mubr.bf16.mxu0 0
      %840 = vmatmul.mubr.bf16.gmra.mxu0 %v717
      %v841 = vpop.f32.mrf.mxu0
      %v842 = vadd.f32 %v533, %v841
      %v843 = vpop.f32.mrf.mxu0
      %v844 = vpop.f32.mrf.mxu0
      %v845 = vadd.f32 %v536, %v844
      %v846 = vpop.f32.mrf.mxu0
      %847 = vmatprep.mubr.bf16.mxu0 0
      %848 = vmatmul.mubr.bf16.gmra.mxu0 %v720
      %v849 = vpop.f32.mrf.mxu0
      %v850 = vadd.f32 %v541, %v849
      %v851 = vpop.f32.mrf.mxu0
      %v852 = vpop.f32.mrf.mxu0
      %v853 = vadd.f32 %v544, %v852
      %v854 = vpop.f32.mrf.mxu0
      %855 = vmatprep.mubr.bf16.mxu0 0
      %856 = vmatmul.mubr.bf16.gmra.mxu0 %v723
      %v857 = vpop.f32.mrf.mxu0
      %v858 = vadd.f32 %v549, %v857
      %v859 = vpop.f32.mrf.mxu0
      %v860 = vpop.f32.mrf.mxu0
      %v861 = vadd.f32 %v552, %v860
      %v862 = vpop.f32.mrf.mxu0
      %863 = vmatprep.mubr.bf16.mxu0 0
      %864 = vmatmul.mubr.bf16.gmra.mxu0 %v726
      %v865 = vpop.f32.mrf.mxu0
      %v866 = vadd.f32 %v557, %v865
      %v867 = vpop.f32.mrf.mxu0
      %v868 = vpop.f32.mrf.mxu0
      %v869 = vadd.f32 %v560, %v868
      %v870 = vpop.f32.mrf.mxu0
      %871 = vmatprep.mubr.bf16.mxu0 0
      %872 = vmatmul.mubr.bf16.gmra.mxu0 %v729
      %v873 = vpop.f32.mrf.mxu0
      %v874 = vadd.f32 %v565, %v873
      %v875 = vpop.f32.mrf.mxu0
      %v876 = vpop.f32.mrf.mxu0
      %v877 = vadd.f32 %v568, %v876
      %v878 = vpop.f32.mrf.mxu0
      %879 = vmatprep.mubr.bf16.mxu0 0
      %880 = vmatmul.mubr.bf16.gmra.mxu0 %v732
      %v881 = vpop.f32.mrf.mxu0
      %v882 = vadd.f32 %v573, %v881
      %v883 = vpop.f32.mrf.mxu0
      %v884 = vpop.f32.mrf.mxu0
      %v885 = vadd.f32 %v576, %v884
      %v886 = vpop.f32.mrf.mxu0
      %887 = vmatprep.mubr.bf16.mxu0 0
      %888 = vmatmul.mubr.bf16.gmra.mxu0 %v735
      %v889 = vpop.f32.mrf.mxu0
      %v890 = vadd.f32 %v581, %v889
      %v891 = vpop.f32.mrf.mxu0
      %v892 = vpop.f32.mrf.mxu0
      %v893 = vadd.f32 %v584, %v892
      %v894 = vpop.f32.mrf.mxu0
      %895 = vmatprep.mubr.bf16.mxu0 0
      %896 = vmatmul.mubr.bf16.gmra.mxu0 %v738
      %v897 = vpop.f32.mrf.mxu0
      %v898 = vadd.f32 %v589, %v897
      %v899 = vpop.f32.mrf.mxu0
      %v900 = vpop.f32.mrf.mxu0
      %v901 = vadd.f32 %v592, %v900
      %v902 = vpop.f32.mrf.mxu0
      %903 = vdwg.mxu0
      %s904 = sadd.s32 %s195, 2
      %s905 = smul.u32 %s904, 16
      %s906 = sshra.s32 %s905, 3
      %s907 = sand.u32 %s905, 7
      %s908 = smul.addr %s906, 4
      %s909 = scalar_lea.vmem %s183, %s908
      %v910 = vld [vmem:[%s909] sm:$0xf]
      %v911 = vld [vmem:[%s909 + $0x4] sm:$0xf]
      %v912 = vld [vmem:[%s909 + $0x8] sm:$0xf]
      %v913 = vld [vmem:[%s909 + $0xc] sm:$0xf]
      %v914 = vld [vmem:[%s909 + $0x10] sm:$0xf]
      %v915 = vld [vmem:[%s909 + $0x14] sm:$0xf]
      %v916 = vld [vmem:[%s909 + $0x18] sm:$0xf]
      %v917 = vld [vmem:[%s909 + $0x1c] sm:$0xf]
      %v918 = vld [vmem:[%s909 + $0x20] sm:$0xf]
      %v919 = vld [vmem:[%s909 + $0x24] sm:$0xf]
      %v920 = vld [vmem:[%s909 + $0x28] sm:$0xf]
      %v921 = vld [vmem:[%s909 + $0x2c] sm:$0xf]
      %v922 = vld [vmem:[%s909 + $0x30] sm:$0xf]
      %v923 = vld [vmem:[%s909 + $0x34] sm:$0xf]
      %v924 = vld [vmem:[%s909 + $0x38] sm:$0xf]
      %v925 = vld [vmem:[%s909 + $0x3c] sm:$0xf]
      %v926 = vld [vmem:[%s909 + $0x40] sm:$0xf]
      %v927 = vld [vmem:[%s909 + $0x44] sm:$0xf]
      %v928 = vld [vmem:[%s909 + $0x48] sm:$0xf]
      %v929 = vld [vmem:[%s909 + $0x4c] sm:$0xf]
      %v930 = vld [vmem:[%s909 + $0x50] sm:$0xf]
      %v931 = vld [vmem:[%s909 + $0x54] sm:$0xf]
      %v932 = vld [vmem:[%s909 + $0x58] sm:$0xf]
      %v933 = vld [vmem:[%s909 + $0x5c] sm:$0xf]
      %v934 = vld [vmem:[%s909 + $0x60] sm:$0xf]
      %v935 = vld [vmem:[%s909 + $0x64] sm:$0xf]
      %v936 = vld [vmem:[%s909 + $0x68] sm:$0xf]
      %v937 = vld [vmem:[%s909 + $0x6c] sm:$0xf]
      %v938 = vld [vmem:[%s909 + $0x70] sm:$0xf]
      %v939 = vld [vmem:[%s909 + $0x74] sm:$0xf]
      %v940 = vld [vmem:[%s909 + $0x78] sm:$0xf]
      %v941 = vld [vmem:[%s909 + $0x7c] sm:$0xf]
      %s942 = scalar_lea.vmem %s1, 48
      %v943 = vld [vmem:[%s942] sm:$0xf]
      %v944 = vld [vmem:[%s942 + $0x4] sm:$0xf]
      %v945 = vld [vmem:[%s942 + $0x8] sm:$0xf]
      %v946 = vld [vmem:[%s942 + $0xc] sm:$0xf]
      %v947 = vld [vmem:[%s942 + $0x10] sm:$0xf]
      %v948 = vld [vmem:[%s942 + $0x14] sm:$0x1]
      %v981 = vunpack.c.l.b16 %v910
      %v982 = vunpack.c.l.b16 %v911
      %v983 = vunpack.c.l.b16 %v912
      %v984 = vunpack.c.l.b16 %v913
      %v985 = vunpack.c.l.b16 %v914
      %v986 = vunpack.c.l.b16 %v915
      %v987 = vunpack.c.l.b16 %v916
      %v988 = vunpack.c.l.b16 %v917
      %v989 = vunpack.c.l.b16 %v918
      %v990 = vunpack.c.l.b16 %v919
      %v991 = vunpack.c.l.b16 %v920
      %v992 = vunpack.c.l.b16 %v921
      %v993 = vunpack.c.l.b16 %v922
      %v994 = vunpack.c.l.b16 %v923
      %v995 = vunpack.c.l.b16 %v924
      %v996 = vunpack.c.l.b16 %v925
      %v997 = vunpack.c.l.b16 %v926
      %v998 = vunpack.c.l.b16 %v927
      %v999 = vunpack.c.l.b16 %v928
      %v1000 = vunpack.c.l.b16 %v929
      %v1001 = vunpack.c.l.b16 %v930
      %v1002 = vunpack.c.l.b16 %v931
      %v1003 = vunpack.c.l.b16 %v932
      %v1004 = vunpack.c.l.b16 %v933
      %v1005 = vunpack.c.l.b16 %v934
      %v1006 = vunpack.c.l.b16 %v935
      %v1007 = vunpack.c.l.b16 %v936
      %v1008 = vunpack.c.l.b16 %v937
      %v1009 = vunpack.c.l.b16 %v938
      %v1010 = vunpack.c.l.b16 %v939
      %v1011 = vunpack.c.l.b16 %v940
      %v1012 = vunpack.c.l.b16 %v941
      %v1013 = vpack.c.b16 %v982, %v981
      %v1014 = vpack.c.b16 %v984, %v983
      %v1015 = vpack.c.b16 %v986, %v985
      %v1016 = vpack.c.b16 %v988, %v987
      %v1017 = vpack.c.b16 %v990, %v989
      %v1018 = vpack.c.b16 %v992, %v991
      %v1019 = vpack.c.b16 %v994, %v993
      %v1020 = vpack.c.b16 %v996, %v995
      %v1021 = vpack.c.b16 %v998, %v997
      %v1022 = vpack.c.b16 %v1000, %v999
      %v1023 = vpack.c.b16 %v1002, %v1001
      %v1024 = vpack.c.b16 %v1004, %v1003
      %v1025 = vpack.c.b16 %v1006, %v1005
      %v1026 = vpack.c.b16 %v1008, %v1007
      %v1027 = vpack.c.b16 %v1010, %v1009
      %v1028 = vpack.c.b16 %v1012, %v1011
      %v1035 = vunpack.c.l.b16 %v943
      %v1036 = vunpack.c.l.b16 %v944
      %v1037 = vunpack.c.l.b16 %v945
      %v1038 = vunpack.c.l.b16 %v946
      %v1039 = vunpack.c.l.b16 %v947
      %v1040 = vunpack.c.l.b16 %v948
      %v1041 = vpack.c.b16 %v1036, %v1035
      %v1042 = vpack.c.b16 %v1038, %v1037
      %v1043 = vpack.c.b16 %v1040, %v1039
      %v1047 = vsel %vm381, %v1013, 0
      %v1050 = vsel %vm381, %v1014, 0
      %v1053 = vsel %vm381, %v1015, 0
      %v1056 = vsel %vm381, %v1016, 0
      %v1059 = vsel %vm381, %v1017, 0
      %v1062 = vsel %vm381, %v1018, 0
      %v1065 = vsel %vm381, %v1019, 0
      %v1068 = vsel %vm381, %v1020, 0
      %v1071 = vsel %vm381, %v1021, 0
      %v1074 = vsel %vm381, %v1022, 0
      %v1077 = vsel %vm381, %v1023, 0
      %v1080 = vsel %vm381, %v1024, 0
      %v1083 = vsel %vm381, %v1025, 0
      %v1086 = vsel %vm381, %v1026, 0
      %v1089 = vsel %vm381, %v1027, 0
      %v1092 = vsel %vm381, %v1028, 0
      %v1095 = vsel %vm430, %v1043, 0
      %1097 = vmatprep.subr.bf16.mxu0 0
      %1098 = vmatpush1.bf16.msra.mxu0 0
      %1099 = vmatprep.subr.bf16.mxu0 0
      %1100 = vmatpush1.bf16.msra.mxu0 0
      %1101 = vmatprep.subr.bf16.mxu0 0
      %1102 = vmatpush1.bf16.msra.mxu0 0
      %1103 = vmatprep.subr.bf16.mxu0 0
      %1104 = vmatpush1.bf16.msra.mxu0 0
      %1105 = vmatprep.subr.bf16.mxu0 0
      %1106 = vmatpush1.bf16.msra.mxu0 0
      %1107 = vmatprep.subr.bf16.mxu0 0
      %1108 = vmatpush1.bf16.msra.mxu0 %v1095
      %1109 = vmatprep.subr.bf16.mxu0 0
      %1110 = vmatpush1.bf16.msra.mxu0 %v1042
      %1111 = vmatprep.subr.bf16.mxu0 0
      %1112 = vmatpush1.bf16.msra.mxu0 %v1041
      %1113 = vmatprep.subr.bf16.mxu0 0
      %1114 = vmatpush2.bf16.msra.mxu0 0
      %1115 = vmatprep.subr.bf16.mxu0 0
      %1116 = vmatpush2.bf16.msra.mxu0 0
      %1117 = vmatprep.subr.bf16.mxu0 0
      %1118 = vmatpush2.bf16.msra.mxu0 0
      %1119 = vmatprep.subr.bf16.mxu0 0
      %1120 = vmatpush2.bf16.msra.mxu0 0
      %1121 = vmatprep.subr.bf16.mxu0 0
      %1122 = vmatpush2.bf16.msra.mxu0 0
      %1123 = vmatprep.subr.bf16.mxu0 0
      %1124 = vmatpush2.bf16.msra.mxu0 0
      %1125 = vmatprep.subr.bf16.mxu0 0
      %1126 = vmatpush2.bf16.msra.mxu0 0
      %1127 = vmatprep.subr.bf16.mxu0 0
      %1128 = vmatpush2.bf16.msra.mxu0 0
      %1129 = vmatprep.mubr.bf16.mxu0 0
      %1130 = vmatmul.mubr.bf16.gmra.mxu0 %v1047
      %v1131 = vpop.f32.mrf.mxu0
      %v1132 = vadd.f32 0.0, %v1131
      %v1133 = vpop.f32.mrf.mxu0
      %v1134 = vpop.f32.mrf.mxu0
      %v1135 = vadd.f32 0.0, %v1134
      %v1136 = vpop.f32.mrf.mxu0
      %1137 = vmatprep.mubr.bf16.mxu0 0
      %1138 = vmatmul.mubr.bf16.gmra.mxu0 %v1050
      %v1139 = vpop.f32.mrf.mxu0
      %v1140 = vadd.f32 0.0, %v1139
      %v1141 = vpop.f32.mrf.mxu0
      %v1142 = vpop.f32.mrf.mxu0
      %v1143 = vadd.f32 0.0, %v1142
      %v1144 = vpop.f32.mrf.mxu0
      %1145 = vmatprep.mubr.bf16.mxu0 0
      %1146 = vmatmul.mubr.bf16.gmra.mxu0 %v1053
      %v1147 = vpop.f32.mrf.mxu0
      %v1148 = vadd.f32 0.0, %v1147
      %v1149 = vpop.f32.mrf.mxu0
      %v1150 = vpop.f32.mrf.mxu0
      %v1151 = vadd.f32 0.0, %v1150
      %v1152 = vpop.f32.mrf.mxu0
      %1153 = vmatprep.mubr.bf16.mxu0 0
      %1154 = vmatmul.mubr.bf16.gmra.mxu0 %v1056
      %v1155 = vpop.f32.mrf.mxu0
      %v1156 = vadd.f32 0.0, %v1155
      %v1157 = vpop.f32.mrf.mxu0
      %v1158 = vpop.f32.mrf.mxu0
      %v1159 = vadd.f32 0.0, %v1158
      %v1160 = vpop.f32.mrf.mxu0
      %1161 = vmatprep.mubr.bf16.mxu0 0
      %1162 = vmatmul.mubr.bf16.gmra.mxu0 %v1059
      %v1163 = vpop.f32.mrf.mxu0
      %v1164 = vadd.f32 0.0, %v1163
      %v1165 = vpop.f32.mrf.mxu0
      %v1166 = vpop.f32.mrf.mxu0
      %v1167 = vadd.f32 0.0, %v1166
      %v1168 = vpop.f32.mrf.mxu0
      %1169 = vmatprep.mubr.bf16.mxu0 0
      %1170 = vmatmul.mubr.bf16.gmra.mxu0 %v1062
      %v1171 = vpop.f32.mrf.mxu0
      %v1172 = vadd.f32 0.0, %v1171
      %v1173 = vpop.f32.mrf.mxu0
      %v1174 = vpop.f32.mrf.mxu0
      %v1175 = vadd.f32 0.0, %v1174
      %v1176 = vpop.f32.mrf.mxu0
      %1177 = vmatprep.mubr.bf16.mxu0 0
      %1178 = vmatmul.mubr.bf16.gmra.mxu0 %v1065
      %v1179 = vpop.f32.mrf.mxu0
      %v1180 = vadd.f32 0.0, %v1179
      %v1181 = vpop.f32.mrf.mxu0
      %v1182 = vpop.f32.mrf.mxu0
      %v1183 = vadd.f32 0.0, %v1182
      %v1184 = vpop.f32.mrf.mxu0
      %1185 = vmatprep.mubr.bf16.mxu0 0
      %1186 = vmatmul.mubr.bf16.gmra.mxu0 %v1068
      %v1187 = vpop.f32.mrf.mxu0
      %v1188 = vadd.f32 0.0, %v1187
      %v1189 = vpop.f32.mrf.mxu0
      %v1190 = vpop.f32.mrf.mxu0
      %v1191 = vadd.f32 0.0, %v1190
      %v1192 = vpop.f32.mrf.mxu0
      %1193 = vmatprep.mubr.bf16.mxu0 0
      %1194 = vmatmul.mubr.bf16.gmra.mxu0 %v1071
      %v1195 = vpop.f32.mrf.mxu0
      %v1196 = vadd.f32 0.0, %v1195
      %v1197 = vpop.f32.mrf.mxu0
      %v1198 = vpop.f32.mrf.mxu0
      %v1199 = vadd.f32 0.0, %v1198
      %v1200 = vpop.f32.mrf.mxu0
      %1201 = vmatprep.mubr.bf16.mxu0 0
      %1202 = vmatmul.mubr.bf16.gmra.mxu0 %v1074
      %v1203 = vpop.f32.mrf.mxu0
      %v1204 = vadd.f32 0.0, %v1203
      %v1205 = vpop.f32.mrf.mxu0
      %v1206 = vpop.f32.mrf.mxu0
      %v1207 = vadd.f32 0.0, %v1206
      %v1208 = vpop.f32.mrf.mxu0
      %1209 = vmatprep.mubr.bf16.mxu0 0
      %1210 = vmatmul.mubr.bf16.gmra.mxu0 %v1077
      %v1211 = vpop.f32.mrf.mxu0
      %v1212 = vadd.f32 0.0, %v1211
      %v1213 = vpop.f32.mrf.mxu0
      %v1214 = vpop.f32.mrf.mxu0
      %v1215 = vadd.f32 0.0, %v1214
      %v1216 = vpop.f32.mrf.mxu0
      %1217 = vmatprep.mubr.bf16.mxu0 0
      %1218 = vmatmul.mubr.bf16.gmra.mxu0 %v1080
      %v1219 = vpop.f32.mrf.mxu0
      %v1220 = vadd.f32 0.0, %v1219
      %v1221 = vpop.f32.mrf.mxu0
      %v1222 = vpop.f32.mrf.mxu0
      %v1223 = vadd.f32 0.0, %v1222
      %v1224 = vpop.f32.mrf.mxu0
      %1225 = vmatprep.mubr.bf16.mxu0 0
      %1226 = vmatmul.mubr.bf16.gmra.mxu0 %v1083
      %v1227 = vpop.f32.mrf.mxu0
      %v1228 = vadd.f32 0.0, %v1227
      %v1229 = vpop.f32.mrf.mxu0
      %v1230 = vpop.f32.mrf.mxu0
      %v1231 = vadd.f32 0.0, %v1230
      %v1232 = vpop.f32.mrf.mxu0
      %1233 = vmatprep.mubr.bf16.mxu0 0
      %1234 = vmatmul.mubr.bf16.gmra.mxu0 %v1086
      %v1235 = vpop.f32.mrf.mxu0
      %v1236 = vadd.f32 0.0, %v1235
      %v1237 = vpop.f32.mrf.mxu0
      %v1238 = vpop.f32.mrf.mxu0
      %v1239 = vadd.f32 0.0, %v1238
      %v1240 = vpop.f32.mrf.mxu0
      %1241 = vmatprep.mubr.bf16.mxu0 0
      %1242 = vmatmul.mubr.bf16.gmra.mxu0 %v1089
      %v1243 = vpop.f32.mrf.mxu0
      %v1244 = vadd.f32 0.0, %v1243
      %v1245 = vpop.f32.mrf.mxu0
      %v1246 = vpop.f32.mrf.mxu0
      %v1247 = vadd.f32 0.0, %v1246
      %v1248 = vpop.f32.mrf.mxu0
      %1249 = vmatprep.mubr.bf16.mxu0 0
      %1250 = vmatmul.mubr.bf16.gmra.mxu0 %v1092
      %v1251 = vpop.f32.mrf.mxu0
      %v1252 = vadd.f32 0.0, %v1251
      %v1253 = vpop.f32.mrf.mxu0
      %v1254 = vpop.f32.mrf.mxu0
      %v1255 = vadd.f32 0.0, %v1254
      %v1256 = vpop.f32.mrf.mxu0
      %1257 = vdwg.mxu0
      %v1258 = vadd.f32 %v778, %v1132
      %v1259 = vadd.f32 %v781, %v1135
      %v1260 = vadd.f32 %v786, %v1140
      %v1261 = vadd.f32 %v789, %v1143
      %v1262 = vadd.f32 %v794, %v1148
      %v1263 = vadd.f32 %v797, %v1151
      %v1264 = vadd.f32 %v802, %v1156
      %v1265 = vadd.f32 %v805, %v1159
      %v1266 = vadd.f32 %v810, %v1164
      %v1267 = vadd.f32 %v813, %v1167
      %v1268 = vadd.f32 %v818, %v1172
      %v1269 = vadd.f32 %v821, %v1175
      %v1270 = vadd.f32 %v826, %v1180
      %v1271 = vadd.f32 %v829, %v1183
      %v1272 = vadd.f32 %v834, %v1188
      %v1273 = vadd.f32 %v837, %v1191
      %v1274 = vadd.f32 %v842, %v1196
      %v1275 = vadd.f32 %v845, %v1199
      %v1276 = vadd.f32 %v850, %v1204
      %v1277 = vadd.f32 %v853, %v1207
      %v1278 = vadd.f32 %v858, %v1212
      %v1279 = vadd.f32 %v861, %v1215
      %v1280 = vadd.f32 %v866, %v1220
      %v1281 = vadd.f32 %v869, %v1223
      %v1282 = vadd.f32 %v874, %v1228
      %v1283 = vadd.f32 %v877, %v1231
      %v1284 = vadd.f32 %v882, %v1236
      %v1285 = vadd.f32 %v885, %v1239
      %v1286 = vadd.f32 %v890, %v1244
      %v1287 = vadd.f32 %v893, %v1247
      %v1288 = vadd.f32 %v898, %v1252
      %v1289 = vadd.f32 %v901, %v1255
      %s1290 = sadd.s32 %s195, 3
      %s1291 = smul.u32 %s1290, 16
      %s1292 = sshra.s32 %s1291, 3
      %s1293 = sand.u32 %s1291, 7
      %s1294 = smul.addr %s1292, 4
      %s1295 = scalar_lea.vmem %s183, %s1294
      %v1296 = vld [vmem:[%s1295] sm:$0xf]
      %v1297 = vld [vmem:[%s1295 + $0x4] sm:$0xf]
      %v1298 = vld [vmem:[%s1295 + $0x8] sm:$0xf]
      %v1299 = vld [vmem:[%s1295 + $0xc] sm:$0xf]
      %v1300 = vld [vmem:[%s1295 + $0x10] sm:$0xf]
      %v1301 = vld [vmem:[%s1295 + $0x14] sm:$0xf]
      %v1302 = vld [vmem:[%s1295 + $0x18] sm:$0xf]
      %v1303 = vld [vmem:[%s1295 + $0x1c] sm:$0xf]
      %v1304 = vld [vmem:[%s1295 + $0x20] sm:$0xf]
      %v1305 = vld [vmem:[%s1295 + $0x24] sm:$0xf]
      %v1306 = vld [vmem:[%s1295 + $0x28] sm:$0xf]
      %v1307 = vld [vmem:[%s1295 + $0x2c] sm:$0xf]
      %v1308 = vld [vmem:[%s1295 + $0x30] sm:$0xf]
      %v1309 = vld [vmem:[%s1295 + $0x34] sm:$0xf]
      %v1310 = vld [vmem:[%s1295 + $0x38] sm:$0xf]
      %v1311 = vld [vmem:[%s1295 + $0x3c] sm:$0xf]
      %v1312 = vld [vmem:[%s1295 + $0x40] sm:$0xf]
      %v1313 = vld [vmem:[%s1295 + $0x44] sm:$0xf]
      %v1314 = vld [vmem:[%s1295 + $0x48] sm:$0xf]
      %v1315 = vld [vmem:[%s1295 + $0x4c] sm:$0xf]
      %v1316 = vld [vmem:[%s1295 + $0x50] sm:$0xf]
      %v1317 = vld [vmem:[%s1295 + $0x54] sm:$0xf]
      %v1318 = vld [vmem:[%s1295 + $0x58] sm:$0xf]
      %v1319 = vld [vmem:[%s1295 + $0x5c] sm:$0xf]
      %v1320 = vld [vmem:[%s1295 + $0x60] sm:$0xf]
      %v1321 = vld [vmem:[%s1295 + $0x64] sm:$0xf]
      %v1322 = vld [vmem:[%s1295 + $0x68] sm:$0xf]
      %v1323 = vld [vmem:[%s1295 + $0x6c] sm:$0xf]
      %v1324 = vld [vmem:[%s1295 + $0x70] sm:$0xf]
      %v1325 = vld [vmem:[%s1295 + $0x74] sm:$0xf]
      %v1326 = vld [vmem:[%s1295 + $0x78] sm:$0xf]
      %v1327 = vld [vmem:[%s1295 + $0x7c] sm:$0xf]
      %s1328 = scalar_lea.vmem %s1, 72
      %v1329 = vld [vmem:[%s1328] sm:$0xf]
      %v1330 = vld [vmem:[%s1328 + $0x4] sm:$0xf]
      %v1331 = vld [vmem:[%s1328 + $0x8] sm:$0xf]
      %v1332 = vld [vmem:[%s1328 + $0xc] sm:$0xf]
      %v1333 = vld [vmem:[%s1328 + $0x10] sm:$0xf]
      %v1334 = vld [vmem:[%s1328 + $0x14] sm:$0x1]
      %v1367 = vunpack.c.l.b16 %v1296
      %v1368 = vunpack.c.l.b16 %v1297
      %v1369 = vunpack.c.l.b16 %v1298
      %v1370 = vunpack.c.l.b16 %v1299
      %v1371 = vunpack.c.l.b16 %v1300
      %v1372 = vunpack.c.l.b16 %v1301
      %v1373 = vunpack.c.l.b16 %v1302
      %v1374 = vunpack.c.l.b16 %v1303
      %v1375 = vunpack.c.l.b16 %v1304
      %v1376 = vunpack.c.l.b16 %v1305
      %v1377 = vunpack.c.l.b16 %v1306
      %v1378 = vunpack.c.l.b16 %v1307
      %v1379 = vunpack.c.l.b16 %v1308
      %v1380 = vunpack.c.l.b16 %v1309
      %v1381 = vunpack.c.l.b16 %v1310
      %v1382 = vunpack.c.l.b16 %v1311
      %v1383 = vunpack.c.l.b16 %v1312
      %v1384 = vunpack.c.l.b16 %v1313
      %v1385 = vunpack.c.l.b16 %v1314
      %v1386 = vunpack.c.l.b16 %v1315
      %v1387 = vunpack.c.l.b16 %v1316
      %v1388 = vunpack.c.l.b16 %v1317
      %v1389 = vunpack.c.l.b16 %v1318
      %v1390 = vunpack.c.l.b16 %v1319
      %v1391 = vunpack.c.l.b16 %v1320
      %v1392 = vunpack.c.l.b16 %v1321
      %v1393 = vunpack.c.l.b16 %v1322
      %v1394 = vunpack.c.l.b16 %v1323
      %v1395 = vunpack.c.l.b16 %v1324
      %v1396 = vunpack.c.l.b16 %v1325
      %v1397 = vunpack.c.l.b16 %v1326
      %v1398 = vunpack.c.l.b16 %v1327
      %v1399 = vpack.c.b16 %v1368, %v1367
      %v1400 = vpack.c.b16 %v1370, %v1369
      %v1401 = vpack.c.b16 %v1372, %v1371
      %v1402 = vpack.c.b16 %v1374, %v1373
      %v1403 = vpack.c.b16 %v1376, %v1375
      %v1404 = vpack.c.b16 %v1378, %v1377
      %v1405 = vpack.c.b16 %v1380, %v1379
      %v1406 = vpack.c.b16 %v1382, %v1381
      %v1407 = vpack.c.b16 %v1384, %v1383
      %v1408 = vpack.c.b16 %v1386, %v1385
      %v1409 = vpack.c.b16 %v1388, %v1387
      %v1410 = vpack.c.b16 %v1390, %v1389
      %v1411 = vpack.c.b16 %v1392, %v1391
      %v1412 = vpack.c.b16 %v1394, %v1393
      %v1413 = vpack.c.b16 %v1396, %v1395
      %v1414 = vpack.c.b16 %v1398, %v1397
      %v1421 = vunpack.c.l.b16 %v1329
      %v1422 = vunpack.c.l.b16 %v1330
      %v1423 = vunpack.c.l.b16 %v1331
      %v1424 = vunpack.c.l.b16 %v1332
      %v1425 = vunpack.c.l.b16 %v1333
      %v1426 = vunpack.c.l.b16 %v1334
      %v1427 = vpack.c.b16 %v1422, %v1421
      %v1428 = vpack.c.b16 %v1424, %v1423
      %v1429 = vpack.c.b16 %v1426, %v1425
      %v1433 = vsel %vm381, %v1399, 0
      %v1436 = vsel %vm381, %v1400, 0
      %v1439 = vsel %vm381, %v1401, 0
      %v1442 = vsel %vm381, %v1402, 0
      %v1445 = vsel %vm381, %v1403, 0
      %v1448 = vsel %vm381, %v1404, 0
      %v1451 = vsel %vm381, %v1405, 0
      %v1454 = vsel %vm381, %v1406, 0
      %v1457 = vsel %vm381, %v1407, 0
      %v1460 = vsel %vm381, %v1408, 0
      %v1463 = vsel %vm381, %v1409, 0
      %v1466 = vsel %vm381, %v1410, 0
      %v1469 = vsel %vm381, %v1411, 0
      %v1472 = vsel %vm381, %v1412, 0
      %v1475 = vsel %vm381, %v1413, 0
      %v1478 = vsel %vm381, %v1414, 0
      %v1481 = vsel %vm430, %v1429, 0
      %1483 = vmatprep.subr.bf16.mxu0 0
      %1484 = vmatpush1.bf16.msra.mxu0 0
      %1485 = vmatprep.subr.bf16.mxu0 0
      %1486 = vmatpush1.bf16.msra.mxu0 0
      %1487 = vmatprep.subr.bf16.mxu0 0
      %1488 = vmatpush1.bf16.msra.mxu0 0
      %1489 = vmatprep.subr.bf16.mxu0 0
      %1490 = vmatpush1.bf16.msra.mxu0 0
      %1491 = vmatprep.subr.bf16.mxu0 0
      %1492 = vmatpush1.bf16.msra.mxu0 0
      %1493 = vmatprep.subr.bf16.mxu0 0
      %1494 = vmatpush1.bf16.msra.mxu0 %v1481
      %1495 = vmatprep.subr.bf16.mxu0 0
      %1496 = vmatpush1.bf16.msra.mxu0 %v1428
      %1497 = vmatprep.subr.bf16.mxu0 0
      %1498 = vmatpush1.bf16.msra.mxu0 %v1427
      %1499 = vmatprep.subr.bf16.mxu0 0
      %1500 = vmatpush2.bf16.msra.mxu0 0
      %1501 = vmatprep.subr.bf16.mxu0 0
      %1502 = vmatpush2.bf16.msra.mxu0 0
      %1503 = vmatprep.subr.bf16.mxu0 0
      %1504 = vmatpush2.bf16.msra.mxu0 0
      %1505 = vmatprep.subr.bf16.mxu0 0
      %1506 = vmatpush2.bf16.msra.mxu0 0
      %1507 = vmatprep.subr.bf16.mxu0 0
      %1508 = vmatpush2.bf16.msra.mxu0 0
      %1509 = vmatprep.subr.bf16.mxu0 0
      %1510 = vmatpush2.bf16.msra.mxu0 0
      %1511 = vmatprep.subr.bf16.mxu0 0
      %1512 = vmatpush2.bf16.msra.mxu0 0
      %1513 = vmatprep.subr.bf16.mxu0 0
      %1514 = vmatpush2.bf16.msra.mxu0 0
      %1515 = vmatprep.mubr.bf16.mxu0 0
      %1516 = vmatmul.mubr.bf16.gmra.mxu0 %v1433
      %v1517 = vpop.f32.mrf.mxu0
      %v1518 = vadd.f32 0.0, %v1517
      %v1519 = vpop.f32.mrf.mxu0
      %v1520 = vpop.f32.mrf.mxu0
      %v1521 = vadd.f32 0.0, %v1520
      %v1522 = vpop.f32.mrf.mxu0
      %1523 = vmatprep.mubr.bf16.mxu0 0
      %1524 = vmatmul.mubr.bf16.gmra.mxu0 %v1436
      %v1525 = vpop.f32.mrf.mxu0
      %v1526 = vadd.f32 0.0, %v1525
      %v1527 = vpop.f32.mrf.mxu0
      %v1528 = vpop.f32.mrf.mxu0
      %v1529 = vadd.f32 0.0, %v1528
      %v1530 = vpop.f32.mrf.mxu0
      %1531 = vmatprep.mubr.bf16.mxu0 0
      %1532 = vmatmul.mubr.bf16.gmra.mxu0 %v1439
      %v1533 = vpop.f32.mrf.mxu0
      %v1534 = vadd.f32 0.0, %v1533
      %v1535 = vpop.f32.mrf.mxu0
      %v1536 = vpop.f32.mrf.mxu0
      %v1537 = vadd.f32 0.0, %v1536
      %v1538 = vpop.f32.mrf.mxu0
      %1539 = vmatprep.mubr.bf16.mxu0 0
      %1540 = vmatmul.mubr.bf16.gmra.mxu0 %v1442
      %v1541 = vpop.f32.mrf.mxu0
      %v1542 = vadd.f32 0.0, %v1541
      %v1543 = vpop.f32.mrf.mxu0
      %v1544 = vpop.f32.mrf.mxu0
      %v1545 = vadd.f32 0.0, %v1544
      %v1546 = vpop.f32.mrf.mxu0
      %1547 = vmatprep.mubr.bf16.mxu0 0
      %1548 = vmatmul.mubr.bf16.gmra.mxu0 %v1445
      %v1549 = vpop.f32.mrf.mxu0
      %v1550 = vadd.f32 0.0, %v1549
      %v1551 = vpop.f32.mrf.mxu0
      %v1552 = vpop.f32.mrf.mxu0
      %v1553 = vadd.f32 0.0, %v1552
      %v1554 = vpop.f32.mrf.mxu0
      %1555 = vmatprep.mubr.bf16.mxu0 0
      %1556 = vmatmul.mubr.bf16.gmra.mxu0 %v1448
      %v1557 = vpop.f32.mrf.mxu0
      %v1558 = vadd.f32 0.0, %v1557
      %v1559 = vpop.f32.mrf.mxu0
      %v1560 = vpop.f32.mrf.mxu0
      %v1561 = vadd.f32 0.0, %v1560
      %v1562 = vpop.f32.mrf.mxu0
      %1563 = vmatprep.mubr.bf16.mxu0 0
      %1564 = vmatmul.mubr.bf16.gmra.mxu0 %v1451
      %v1565 = vpop.f32.mrf.mxu0
      %v1566 = vadd.f32 0.0, %v1565
      %v1567 = vpop.f32.mrf.mxu0
      %v1568 = vpop.f32.mrf.mxu0
      %v1569 = vadd.f32 0.0, %v1568
      %v1570 = vpop.f32.mrf.mxu0
      %1571 = vmatprep.mubr.bf16.mxu0 0
      %1572 = vmatmul.mubr.bf16.gmra.mxu0 %v1454
      %v1573 = vpop.f32.mrf.mxu0
      %v1574 = vadd.f32 0.0, %v1573
      %v1575 = vpop.f32.mrf.mxu0
      %v1576 = vpop.f32.mrf.mxu0
      %v1577 = vadd.f32 0.0, %v1576
      %v1578 = vpop.f32.mrf.mxu0
      %1579 = vmatprep.mubr.bf16.mxu0 0
      %1580 = vmatmul.mubr.bf16.gmra.mxu0 %v1457
      %v1581 = vpop.f32.mrf.mxu0
      %v1582 = vadd.f32 0.0, %v1581
      %v1583 = vpop.f32.mrf.mxu0
      %v1584 = vpop.f32.mrf.mxu0
      %v1585 = vadd.f32 0.0, %v1584
      %v1586 = vpop.f32.mrf.mxu0
      %1587 = vmatprep.mubr.bf16.mxu0 0
      %1588 = vmatmul.mubr.bf16.gmra.mxu0 %v1460
      %v1589 = vpop.f32.mrf.mxu0
      %v1590 = vadd.f32 0.0, %v1589
      %v1591 = vpop.f32.mrf.mxu0
      %v1592 = vpop.f32.mrf.mxu0
      %v1593 = vadd.f32 0.0, %v1592
      %v1594 = vpop.f32.mrf.mxu0
      %1595 = vmatprep.mubr.bf16.mxu0 0
      %1596 = vmatmul.mubr.bf16.gmra.mxu0 %v1463
      %v1597 = vpop.f32.mrf.mxu0
      %v1598 = vadd.f32 0.0, %v1597
      %v1599 = vpop.f32.mrf.mxu0
      %v1600 = vpop.f32.mrf.mxu0
      %v1601 = vadd.f32 0.0, %v1600
      %v1602 = vpop.f32.mrf.mxu0
      %1603 = vmatprep.mubr.bf16.mxu0 0
      %1604 = vmatmul.mubr.bf16.gmra.mxu0 %v1466
      %v1605 = vpop.f32.mrf.mxu0
      %v1606 = vadd.f32 0.0, %v1605
      %v1607 = vpop.f32.mrf.mxu0
      %v1608 = vpop.f32.mrf.mxu0
      %v1609 = vadd.f32 0.0, %v1608
      %v1610 = vpop.f32.mrf.mxu0
      %1611 = vmatprep.mubr.bf16.mxu0 0
      %1612 = vmatmul.mubr.bf16.gmra.mxu0 %v1469
      %v1613 = vpop.f32.mrf.mxu0
      %v1614 = vadd.f32 0.0, %v1613
      %v1615 = vpop.f32.mrf.mxu0
      %v1616 = vpop.f32.mrf.mxu0
      %v1617 = vadd.f32 0.0, %v1616
      %v1618 = vpop.f32.mrf.mxu0
      %1619 = vmatprep.mubr.bf16.mxu0 0
      %1620 = vmatmul.mubr.bf16.gmra.mxu0 %v1472
      %v1621 = vpop.f32.mrf.mxu0
      %v1622 = vadd.f32 0.0, %v1621
      %v1623 = vpop.f32.mrf.mxu0
      %v1624 = vpop.f32.mrf.mxu0
      %v1625 = vadd.f32 0.0, %v1624
      %v1626 = vpop.f32.mrf.mxu0
      %1627 = vmatprep.mubr.bf16.mxu0 0
      %1628 = vmatmul.mubr.bf16.gmra.mxu0 %v1475
      %v1629 = vpop.f32.mrf.mxu0
      %v1630 = vadd.f32 0.0, %v1629
      %v1631 = vpop.f32.mrf.mxu0
      %v1632 = vpop.f32.mrf.mxu0
      %v1633 = vadd.f32 0.0, %v1632
      %v1634 = vpop.f32.mrf.mxu0
      %1635 = vmatprep.mubr.bf16.mxu0 0
      %1636 = vmatmul.mubr.bf16.gmra.mxu0 %v1478
      %v1637 = vpop.f32.mrf.mxu0
      %v1638 = vadd.f32 0.0, %v1637
      %v1639 = vpop.f32.mrf.mxu0
      %v1640 = vpop.f32.mrf.mxu0
      %v1641 = vadd.f32 0.0, %v1640
      %v1642 = vpop.f32.mrf.mxu0
      %1643 = vdwg.mxu0
      %v1644 = vadd.f32 %v1258, %v1518
      %v1645 = vadd.f32 %v1259, %v1521
      %v1646 = vadd.f32 %v1260, %v1526
      %v1647 = vadd.f32 %v1261, %v1529
      %v1648 = vadd.f32 %v1262, %v1534
      %v1649 = vadd.f32 %v1263, %v1537
      %v1650 = vadd.f32 %v1264, %v1542
      %v1651 = vadd.f32 %v1265, %v1545
      %v1652 = vadd.f32 %v1266, %v1550
      %v1653 = vadd.f32 %v1267, %v1553
      %v1654 = vadd.f32 %v1268, %v1558
      %v1655 = vadd.f32 %v1269, %v1561
      %v1656 = vadd.f32 %v1270, %v1566
      %v1657 = vadd.f32 %v1271, %v1569
      %v1658 = vadd.f32 %v1272, %v1574
      %v1659 = vadd.f32 %v1273, %v1577
      %v1660 = vadd.f32 %v1274, %v1582
      %v1661 = vadd.f32 %v1275, %v1585
      %v1662 = vadd.f32 %v1276, %v1590
      %v1663 = vadd.f32 %v1277, %v1593
      %v1664 = vadd.f32 %v1278, %v1598
      %v1665 = vadd.f32 %v1279, %v1601
      %v1666 = vadd.f32 %v1280, %v1606
      %v1667 = vadd.f32 %v1281, %v1609
      %v1668 = vadd.f32 %v1282, %v1614
      %v1669 = vadd.f32 %v1283, %v1617
      %v1670 = vadd.f32 %v1284, %v1622
      %v1671 = vadd.f32 %v1285, %v1625
      %v1672 = vadd.f32 %v1286, %v1630
      %v1673 = vadd.f32 %v1287, %v1633
      %v1674 = vadd.f32 %v1288, %v1638
      %v1675 = vadd.f32 %v1289, %v1641
      %v1676 = vld [vmem:[%s2] sm:$0x1]
      %v1678 = vlaneseq
      %v1679 = vshrl.u32 %v1678, 7
      %v1680 = vsub.s32 0, %v1679
      %v1681 = vrot.slane %v1676, %v1680
      %v1683 = vadd.f32 %v1644, %v1681
      %v1684 = vadd.f32 %v1645, %v1681
      %v1685 = vadd.f32 %v1646, %v1681
      %v1686 = vadd.f32 %v1647, %v1681
      %v1687 = vadd.f32 %v1648, %v1681
      %v1688 = vadd.f32 %v1649, %v1681
      %v1689 = vadd.f32 %v1650, %v1681
      %v1690 = vadd.f32 %v1651, %v1681
      %v1691 = vadd.f32 %v1652, %v1681
      %v1692 = vadd.f32 %v1653, %v1681
      %v1693 = vadd.f32 %v1654, %v1681
      %v1694 = vadd.f32 %v1655, %v1681
      %v1695 = vadd.f32 %v1656, %v1681
      %v1696 = vadd.f32 %v1657, %v1681
      %v1697 = vadd.f32 %v1658, %v1681
      %v1698 = vadd.f32 %v1659, %v1681
      %v1699 = vadd.f32 %v1660, %v1681
      %v1700 = vadd.f32 %v1661, %v1681
      %v1701 = vadd.f32 %v1662, %v1681
      %v1702 = vadd.f32 %v1663, %v1681
      %v1703 = vadd.f32 %v1664, %v1681
      %v1704 = vadd.f32 %v1665, %v1681
      %v1705 = vadd.f32 %v1666, %v1681
      %v1706 = vadd.f32 %v1667, %v1681
      %v1707 = vadd.f32 %v1668, %v1681
      %v1708 = vadd.f32 %v1669, %v1681
      %v1709 = vadd.f32 %v1670, %v1681
      %v1710 = vadd.f32 %v1671, %v1681
      %v1711 = vadd.f32 %v1672, %v1681
      %v1712 = vadd.f32 %v1673, %v1681
      %v1713 = vadd.f32 %v1674, %v1681
      %v1714 = vadd.f32 %v1675, %v1681
      %vm1715 = vcmask 523264
      %1716 = vst.msk [vmem:[%s192] sm:$0xff] %vm1715, %v1683
      %1717 = vst.msk [vmem:[%s192 + $0x8] sm:$0xff] %vm1715, %v1684
      %1718 = vst.msk [vmem:[%s192 + $0x10] sm:$0xff] %vm1715, %v1685
      %1719 = vst.msk [vmem:[%s192 + $0x18] sm:$0xff] %vm1715, %v1686
      %1720 = vst.msk [vmem:[%s192 + $0x20] sm:$0xff] %vm1715, %v1687
      %1721 = vst.msk [vmem:[%s192 + $0x28] sm:$0xff] %vm1715, %v1688
      %1722 = vst.msk [vmem:[%s192 + $0x30] sm:$0xff] %vm1715, %v1689
      %1723 = vst.msk [vmem:[%s192 + $0x38] sm:$0xff] %vm1715, %v1690
      %1724 = vst.msk [vmem:[%s192 + $0x40] sm:$0xff] %vm1715, %v1691
      %1725 = vst.msk [vmem:[%s192 + $0x48] sm:$0xff] %vm1715, %v1692
      %1726 = vst.msk [vmem:[%s192 + $0x50] sm:$0xff] %vm1715, %v1693
      %1727 = vst.msk [vmem:[%s192 + $0x58] sm:$0xff] %vm1715, %v1694
      %1728 = vst.msk [vmem:[%s192 + $0x60] sm:$0xff] %vm1715, %v1695
      %1729 = vst.msk [vmem:[%s192 + $0x68] sm:$0xff] %vm1715, %v1696
      %1730 = vst.msk [vmem:[%s192 + $0x70] sm:$0xff] %vm1715, %v1697
      %1731 = vst.msk [vmem:[%s192 + $0x78] sm:$0xff] %vm1715, %v1698
      %1732 = vst.msk [vmem:[%s192 + $0x80] sm:$0xff] %vm1715, %v1699
      %1733 = vst.msk [vmem:[%s192 + $0x88] sm:$0xff] %vm1715, %v1700
      %1734 = vst.msk [vmem:[%s192 + $0x90] sm:$0xff] %vm1715, %v1701
      %1735 = vst.msk [vmem:[%s192 + $0x98] sm:$0xff] %vm1715, %v1702
      %1736 = vst.msk [vmem:[%s192 + $0xa0] sm:$0xff] %vm1715, %v1703
      %1737 = vst.msk [vmem:[%s192 + $0xa8] sm:$0xff] %vm1715, %v1704
      %1738 = vst.msk [vmem:[%s192 + $0xb0] sm:$0xff] %vm1715, %v1705
      %1739 = vst.msk [vmem:[%s192 + $0xb8] sm:$0xff] %vm1715, %v1706
      %1740 = vst.msk [vmem:[%s192 + $0xc0] sm:$0xff] %vm1715, %v1707
      %1741 = vst.msk [vmem:[%s192 + $0xc8] sm:$0xff] %vm1715, %v1708
      %1742 = vst.msk [vmem:[%s192 + $0xd0] sm:$0xff] %vm1715, %v1709
      %1743 = vst.msk [vmem:[%s192 + $0xd8] sm:$0xff] %vm1715, %v1710
      %1744 = vst.msk [vmem:[%s192 + $0xe0] sm:$0xff] %vm1715, %v1711
      %1745 = vst.msk [vmem:[%s192 + $0xe8] sm:$0xff] %vm1715, %v1712
      %1746 = vst.msk [vmem:[%s192 + $0xf0] sm:$0xff] %vm1715, %v1713
      %1747 = vst.msk [vmem:[%s192 + $0xf8] sm:$0xff] %vm1715, %v1714
      %s1748 = smul.u32 32, %s19
      %p1749 = scmp.lt.s32.totalorder %s18, 1
      %s1750 = scalar_select %p1749, %s18, 1
      %p1751 = scmp.lt.s32.totalorder %s1748, 31
      %s1752 = scalar_select %p1751, %s1748, 31
      %s1753 = smul.addr %s1750, 32
      %s1754 = sadd.s32 %s1752, %s1753
      %s1755 = smul.addr %s1754, 8
      %s1756 = scalar_lea.vmem %s3, %s1755
      // Predicated region
      $region33: #{tpu_custom_call.1} parent=31 // pred_check
        %p1757 = pneg %p114
      $region34: #{tpu_custom_call.1} parent=31 // pred_check_branch
        %1759 = sbr.rel (%p1757) target = $region36
      $region35: #{tpu_custom_call.1} parent=31 // pred_region
        %s1760 = smul.u32 32, %s19
      $region36: #{tpu_custom_call.1} parent=31 // pred_fallthru
        _
    $region32: #{tpu_custom_call.1} parent=5 // pred_fallthru
      _
    %p1761 = scmp.le.s32.totalorder 2, %s9
    // Predicated region
    $region37: #{tpu_custom_call.1} parent=5 // pred_check
      %p1762 = pneg %p1761
    $region38: #{tpu_custom_call.1} parent=5 // pred_check_branch
      %1764 = sbr.rel (%p1762) target = $region40
    $region39: #{tpu_custom_call.1} parent=5 // pred_region
      %s1765 = ssub.s32 %s9, 2
      // Predicated region
      $region41: #{tpu_custom_call.1} parent=39 // pred_check
        %p1766 = pneg %p120
      $region42: #{tpu_custom_call.1} parent=39 // pred_check_branch
        %1768 = sbr.rel (%p1766) target = $region44
      $region43: #{tpu_custom_call.1} parent=39 // pred_region
        %s1769 = smul.u32 32, %s21
        %p1770 = scmp.lt.s32.totalorder %s20, 1
        %s1771 = scalar_select %p1770, %s20, 1
        %p1772 = scmp.lt.s32.totalorder %s1769, 31
        %s1773 = scalar_select %p1772, %s1769, 31
        %s1774 = smul.addr %s1771, 32
        %s1775 = sadd.s32 %s1773, %s1774
        %s1776 = smul.addr %s1775, 8
        %s1777 = scalar_lea.vmem %s3, %s1776
      $region44: #{tpu_custom_call.1} parent=39 // pred_fallthru
        _
    $region40: #{tpu_custom_call.1} parent=5 // pred_fallthru
      _
  $region6: #{tpu_custom_call.1} parent=0 // loop_footer
    %s13 = sadd.s32 1, %s9
  $region7: #{tpu_custom_call.1} parent=0 // loop_footer_branch
    %8 = sbr.rel target = $region3
  $region8: #{tpu_custom_call.1} parent=0 // loop_exit
    _

</llo_original>
